<compile_context>
chip_gen: v5e
topology: v5e:2x2
jax: 0.10.0
libtpu: 0.0.40
codegen_flags: <defaults>
</compile_context>

<pallas_src>
import jax
import jax.numpy as jnp
import numpy as np
from jax.experimental import pallas as pl
from jax.experimental.pallas import tpu as pltpu

K = 3
FEAT_STRIDE = 520 // 16   # 32
POOL = 7                  # adaptive pool intermediate size


def _floor_div(v, d):
    """Exact floor(v / d) for small non-negative int32 vectors without vector
    integer division.  Exact while the f32 rounding error of v*(1/d) stays
    below the 1e-3 bias, i.e. v up to ~2e3 -- plenty for crop extents here."""
    return jnp.floor(v.astype(jnp.float32) * (1.0 / d) + 1e-3).astype(jnp.int32)


def _make_roi_pool_kernel(H, W, feat_stride):
    hw = H * W
    w_pow2 = (W & (W - 1)) == 0
    w_shift = W.bit_length() - 1
    fs_pow2 = (feat_stride & (feat_stride - 1)) == 0
    fs_shift = feat_stride.bit_length() - 1
    # Adaptive-pool bin extent along an axis of length <= L lies in
    # [1, ceil(L/POOL) + 1]  (the +1 is real: e.g. L=16 -> bin 3 spans 4 rows).
    max_ext_y = -(-H // POOL) + 1
    max_ext_x = -(-W // POOL) + 1

    def _const_inv(ext, max_ext):
        # exact 1 / (POOL * ext) via a constant select chain (no f32 divides)
        inv = jnp.full(ext.shape, np.float32(1.0 / (POOL * max_ext)), jnp.float32)
        for v in range(max_ext - 1, 0, -1):
            inv = jnp.where(ext == v, np.float32(1.0 / (POOL * v)), inv)
        return inv

    def kernel(rois_ref, conv_ref, out_ref):
        """rois_ref: VMEM (n, 4) int32 raw ROI coords [ymin, xmin, ymax, xmax]
           conv_ref: VMEM (C, H*W) float32 (spatial flattened, C >= 8)
           out_ref : VMEM (n, 8) float32."""
        n = rois_ref.shape[0]

        rois = rois_ref[...]
        if fs_pow2:
            rois = jnp.right_shift(rois, fs_shift)      # rois // feat_stride
        else:
            rois = _floor_div(rois, feat_stride)

        # Clamp to the feature map (mirrors torch slice clamping) and force
        # extents >= 1 so degenerate boxes cannot make Inf/NaN weights.
        ymin = jnp.clip(rois[:, 0:1], 0, H - 1)          # (n, 1)
        xmin = jnp.clip(rois[:, 1:2], 0, W - 1)
        yend = jnp.clip(rois[:, 2:3] + 1, ymin + 1, H)   # exclusive crop ends
        xend = jnp.clip(rois[:, 3:4] + 1, xmin + 1, W)
        hb = yend - ymin                                  # crop heights (n, 1)
        wb = xend - xmin                                  # crop widths  (n, 1)

        idx = jax.lax.broadcasted_iota(jnp.int32, (1, hw), 1)   # flat pixel idx
        if w_pow2:
            y = jnp.right_shift(idx, w_shift)
            x = jnp.bitwise_and(idx, W - 1)
        else:
            y = _floor_div(idx, W)
            x = idx - y * W
        ry = y - ymin                                     # (n, H*W) crop-row coord
        rx = x - xmin                                     # (n, H*W) crop-col coord

        # Separable adaptive-pool weights, vectorized over ROIs:
        #   wy(y) = sum over y-bins containing y of 1/(7*bin_height)
        #   wx(x) = sum over x-bins containing x of 1/(7*bin_width)
        # (the two 1/7 factors fold the final mean over the 49 bins).
        # Pixels outside the crop match no bin -> weight 0.
        wy = jnp.zeros((n, hw), jnp.float32)
        wx = jnp.zeros((n, hw), jnp.float32)
        for b in range(POOL):
            sy = _floor_div(b * hb, POOL)
            ey = _floor_div((b + 1) * hb + (POOL - 1), POOL)   # ceil((b+1)*hb/7)
            inv_y = _const_inv(ey - sy, max_ext_y)
            wy = wy + jnp.where((ry >= sy) & (ry < ey), inv_y, 0.0)

            sx = _floor_div(b * wb, POOL)
            ex = _floor_div((b + 1) * wb + (POOL - 1), POOL)
            inv_x = _const_inv(ex - sx, max_ext_x)
            wx = wx + jnp.where((rx >= sx) & (rx < ex), inv_x, 0.0)

        weight = wy * wx                                  # (n, H*W), 1/49 folded in

        # Single MXU matmul for every ROI: (n, HW) . (8, HW)^T -> (n, 8).
        out_ref[...] = jax.lax.dot_general(
            weight, conv_ref[0:8, :],
            dimension_numbers=(((1,), (1,)), ((), ())),
            precision=jax.lax.Precision.HIGHEST,
            preferred_element_type=jnp.float32)

    return kernel


def sister_regression_roi_pooling(conv_out, rois, feat_stride=FEAT_STRIDE):
    """conv_out: (1, 8*k^2, H, W) float32 (NCHW); rois: (n, 4) int
       returns (n, 2, 4) float32 matching the PyTorch module."""
    n = rois.shape[0]
    C, H, W = conv_out.shape[1], conv_out.shape[2], conv_out.shape[3]
    conv_flat = conv_out.reshape(C, H * W)        # free row-major reshape
    rois_i32 = jnp.asarray(rois, jnp.int32)       # no-op if already int32

    out = pl.pallas_call(
        _make_roi_pool_kernel(H, W, feat_stride),
        out_shape=jax.ShapeDtypeStruct((n, 8), jnp.float32),
        in_specs=[pl.BlockSpec(memory_space=pltpu.MemorySpace.VMEM),
                  pl.BlockSpec(memory_space=pltpu.MemorySpace.VMEM)],
        out_specs=pl.BlockSpec(memory_space=pltpu.MemorySpace.VMEM),
    )(rois_i32, conv_flat)
    return out.reshape(n, 2, 4)


def reference_numpy(conv_out, rois, feat_stride=FEAT_STRIDE):
    """Pure numpy re-implementation of the PyTorch forward (for verification)."""
    rois = np.asarray(rois) // feat_stride
    n = rois.shape[0]
    out = np.zeros((n, 2, 4), np.float32)
    for i in range(n):
        ymin = int(rois[i, 0]); xmin = int(rois[i, 1])
        ymax = int(rois[i, 2]) + 1; xmax = int(rois[i, 3]) + 1
        block = conv_out[0, :, ymin:ymax, xmin:xmax]     # (C, hb, wb)
        hb, wb = block.shape[1], block.shape[2]
        acc = np.zeros(block.shape[0], np.float64)
        for bi in range(POOL):
            sy = (bi * hb) // POOL
            ey = -((-(bi + 1) * hb) // POOL)
            for bj in range(POOL):
                sx = (bj * wb) // POOL
                ex = -((-(bj + 1) * wb) // POOL)
                acc += block[:, sy:ey, sx:ex].mean(axis=(1, 2))
        acc /= float(POOL * POOL)
        out[i] = acc[:8].reshape(2, 4).astype(np.float32)
    return out


if __name__ == "__main__":
    key = jax.random.PRNGKey(0)
    k1, k2 = jax.random.split(key)

    H = W = 16
    n_rois = 4
    conv_out = jax.random.normal(k1, (1, 8 * K * K, H, W), dtype=jnp.float32)

    # ROIs as [ymin, xmin, ymax, xmax] in original-image coords (< H*feat_stride
    # so the crop stays in-bounds after // feat_stride, matching torch slicing).
    raw = jax.random.randint(k2, (n_rois, 4), 0, H * FEAT_STRIDE, dtype=jnp.int32)
    ymin = jnp.minimum(raw[:, 0], raw[:, 2]); ymax = jnp.maximum(raw[:, 0], raw[:, 2])
    xmin = jnp.minimum(raw[:, 1], raw[:, 3]); xmax = jnp.maximum(raw[:, 1], raw[:, 3])
    rois = jnp.stack([ymin, xmin, ymax, xmax], axis=1)

    out = sister_regression_roi_pooling(conv_out, rois)
    out = jax.block_until_ready(out)

    ref = reference_numpy(np.asarray(conv_out), np.asarray(rois))
    np.testing.assert_allclose(np.asarray(out), ref, rtol=1e-4, atol=1e-4)
    print("KERNEL_OK")
</pallas_src>

<mosaic_0001>
module attributes {stable_mosaic.version = 11 : i64} {
  func.func @kernel(%arg0: memref<4x4xi32, #tpu.memory_space<vmem>>, %arg1: memref<72x256xf32, #tpu.memory_space<vmem>>, %arg2: memref<4x8xf32, #tpu.memory_space<vmem>>) attributes {dimension_semantics = [], scalar_prefetch = 0 : i64, scratch_operands = 0 : i64, tpu.core_type = #tpu.core_type<tc>} {
    %c0 = arith.constant 0 : index
    %c0_0 = arith.constant 0 : index
    %0 = vector.load %arg0[%c0, %c0_0] : memref<4x4xi32, #tpu.memory_space<vmem>>, vector<4x4xi32>
    %c5_i32 = arith.constant 5 : i32
    %1 = vector.broadcast %c5_i32 : i32 to vector<4x4xi32>
    %2 = arith.shrsi %0, %1 : vector<4x4xi32>
    %3 = vector.extract_strided_slice %2 {offsets = [0, 0], sizes = [4, 1], strides = [1, 1]} : vector<4x4xi32> to vector<4x1xi32>
    %c0_i32 = arith.constant 0 : i32
    %c15_i32 = arith.constant 15 : i32
    %4 = vector.broadcast %c0_i32 : i32 to vector<4x1xi32>
    %5 = arith.maxsi %4, %3 : vector<4x1xi32>
    %6 = vector.broadcast %c15_i32 : i32 to vector<4x1xi32>
    %7 = arith.minsi %6, %5 : vector<4x1xi32>
    %8 = vector.extract_strided_slice %2 {offsets = [0, 1], sizes = [4, 1], strides = [1, 1]} : vector<4x4xi32> to vector<4x1xi32>
    %c0_i32_1 = arith.constant 0 : i32
    %c15_i32_2 = arith.constant 15 : i32
    %9 = vector.broadcast %c0_i32_1 : i32 to vector<4x1xi32>
    %10 = arith.maxsi %9, %8 : vector<4x1xi32>
    %11 = vector.broadcast %c15_i32_2 : i32 to vector<4x1xi32>
    %12 = arith.minsi %11, %10 : vector<4x1xi32>
    %13 = vector.extract_strided_slice %2 {offsets = [0, 2], sizes = [4, 1], strides = [1, 1]} : vector<4x4xi32> to vector<4x1xi32>
    %c1_i32 = arith.constant 1 : i32
    %14 = vector.broadcast %c1_i32 : i32 to vector<4x1xi32>
    %15 = arith.addi %13, %14 : vector<4x1xi32>
    %c1_i32_3 = arith.constant 1 : i32
    %16 = vector.broadcast %c1_i32_3 : i32 to vector<4x1xi32>
    %17 = arith.addi %7, %16 : vector<4x1xi32>
    %c16_i32 = arith.constant 16 : i32
    %18 = arith.maxsi %17, %15 : vector<4x1xi32>
    %19 = vector.broadcast %c16_i32 : i32 to vector<4x1xi32>
    %20 = arith.minsi %19, %18 : vector<4x1xi32>
    %21 = vector.extract_strided_slice %2 {offsets = [0, 3], sizes = [4, 1], strides = [1, 1]} : vector<4x4xi32> to vector<4x1xi32>
    %c1_i32_4 = arith.constant 1 : i32
    %22 = vector.broadcast %c1_i32_4 : i32 to vector<4x1xi32>
    %23 = arith.addi %21, %22 : vector<4x1xi32>
    %c1_i32_5 = arith.constant 1 : i32
    %24 = vector.broadcast %c1_i32_5 : i32 to vector<4x1xi32>
    %25 = arith.addi %12, %24 : vector<4x1xi32>
    %c16_i32_6 = arith.constant 16 : i32
    %26 = arith.maxsi %25, %23 : vector<4x1xi32>
    %27 = vector.broadcast %c16_i32_6 : i32 to vector<4x1xi32>
    %28 = arith.minsi %27, %26 : vector<4x1xi32>
    %29 = arith.subi %20, %7 : vector<4x1xi32>
    %30 = arith.subi %28, %12 : vector<4x1xi32>
    %31 = tpu.iota {dimensions = array<i32: 1>} : vector<1x256xi32>
    %c4_i32 = arith.constant 4 : i32
    %32 = vector.broadcast %c4_i32 : i32 to vector<1x256xi32>
    %33 = arith.shrsi %31, %32 : vector<1x256xi32>
    %c15_i32_7 = arith.constant 15 : i32
    %34 = vector.broadcast %c15_i32_7 : i32 to vector<1x256xi32>
    %35 = arith.andi %31, %34 : vector<1x256xi32>
    %36 = vector.broadcast %33 : vector<1x256xi32> to vector<4x256xi32>
    %37 = vector.broadcast %7 : vector<4x1xi32> to vector<4x256xi32>
    %38 = arith.subi %36, %37 : vector<4x256xi32>
    %39 = vector.broadcast %35 : vector<1x256xi32> to vector<4x256xi32>
    %40 = vector.broadcast %12 : vector<4x1xi32> to vector<4x256xi32>
    %41 = arith.subi %39, %40 : vector<4x256xi32>
    %cst = arith.constant 0.000000e+00 : f32
    %42 = vector.broadcast %cst : f32 to vector<4x256xf32>
    %cst_8 = arith.constant 0.000000e+00 : f32
    %43 = vector.broadcast %cst_8 : f32 to vector<4x256xf32>
    %c0_i32_9 = arith.constant 0 : i32
    %44 = vector.broadcast %c0_i32_9 : i32 to vector<4x1xi32>
    %45 = arith.muli %44, %29 : vector<4x1xi32>
    %46 = arith.sitofp %45 : vector<4x1xi32> to vector<4x1xf32>
    %cst_10 = arith.constant 0.142857149 : f32
    %47 = vector.broadcast %cst_10 : f32 to vector<4x1xf32>
    %48 = arith.mulf %46, %47 : vector<4x1xf32>
    %cst_11 = arith.constant 1.000000e-03 : f32
    %49 = vector.broadcast %cst_11 : f32 to vector<4x1xf32>
    %50 = arith.addf %48, %49 : vector<4x1xf32>
    %51 = math.floor %50 : vector<4x1xf32>
    %52 = arith.fptosi %51 : vector<4x1xf32> to vector<4x1xi32>
    %c1_i32_12 = arith.constant 1 : i32
    %53 = vector.broadcast %c1_i32_12 : i32 to vector<4x1xi32>
    %54 = arith.muli %53, %29 : vector<4x1xi32>
    %c6_i32 = arith.constant 6 : i32
    %55 = vector.broadcast %c6_i32 : i32 to vector<4x1xi32>
    %56 = arith.addi %54, %55 : vector<4x1xi32>
    %57 = arith.sitofp %56 : vector<4x1xi32> to vector<4x1xf32>
    %cst_13 = arith.constant 0.142857149 : f32
    %58 = vector.broadcast %cst_13 : f32 to vector<4x1xf32>
    %59 = arith.mulf %57, %58 : vector<4x1xf32>
    %cst_14 = arith.constant 1.000000e-03 : f32
    %60 = vector.broadcast %cst_14 : f32 to vector<4x1xf32>
    %61 = arith.addf %59, %60 : vector<4x1xf32>
    %62 = math.floor %61 : vector<4x1xf32>
    %63 = arith.fptosi %62 : vector<4x1xf32> to vector<4x1xi32>
    %64 = arith.subi %63, %52 : vector<4x1xi32>
    %cst_15 = arith.constant 0.0357142873 : f32
    %65 = vector.broadcast %cst_15 : f32 to vector<4x1xf32>
    %c3_i32 = arith.constant 3 : i32
    %66 = vector.broadcast %c3_i32 : i32 to vector<4x1xi32>
    %67 = arith.cmpi eq, %64, %66 : vector<4x1xi32>
    %cst_16 = arith.constant 0.0476190485 : f32
    %68 = vector.broadcast %cst_16 : f32 to vector<4x1xf32>
    %69 = arith.select %67, %68, %65 : vector<4x1xi1>, vector<4x1xf32>
    %c2_i32 = arith.constant 2 : i32
    %70 = vector.broadcast %c2_i32 : i32 to vector<4x1xi32>
    %71 = arith.cmpi eq, %64, %70 : vector<4x1xi32>
    %cst_17 = arith.constant 0.0714285746 : f32
    %72 = vector.broadcast %cst_17 : f32 to vector<4x1xf32>
    %73 = arith.select %71, %72, %69 : vector<4x1xi1>, vector<4x1xf32>
    %c1_i32_18 = arith.constant 1 : i32
    %74 = vector.broadcast %c1_i32_18 : i32 to vector<4x1xi32>
    %75 = arith.cmpi eq, %64, %74 : vector<4x1xi32>
    %cst_19 = arith.constant 0.142857149 : f32
    %76 = vector.broadcast %cst_19 : f32 to vector<4x1xf32>
    %77 = arith.select %75, %76, %73 : vector<4x1xi1>, vector<4x1xf32>
    %78 = vector.broadcast %52 : vector<4x1xi32> to vector<4x256xi32>
    %79 = arith.cmpi sge, %38, %78 : vector<4x256xi32>
    %80 = vector.broadcast %63 : vector<4x1xi32> to vector<4x256xi32>
    %81 = arith.cmpi slt, %38, %80 : vector<4x256xi32>
    %82 = arith.andi %79, %81 : vector<4x256xi1>
    %cst_20 = arith.constant 0.000000e+00 : f32
    %83 = vector.shape_cast %77 : vector<4x1xf32> to vector<4x1xf32>
    %84 = vector.broadcast %83 : vector<4x1xf32> to vector<4x256xf32>
    %85 = vector.broadcast %cst_20 : f32 to vector<4x256xf32>
    %86 = arith.select %82, %84, %85 : vector<4x256xi1>, vector<4x256xf32>
    %87 = arith.addf %42, %86 : vector<4x256xf32>
    %c0_i32_21 = arith.constant 0 : i32
    %88 = vector.broadcast %c0_i32_21 : i32 to vector<4x1xi32>
    %89 = arith.muli %88, %30 : vector<4x1xi32>
    %90 = arith.sitofp %89 : vector<4x1xi32> to vector<4x1xf32>
    %cst_22 = arith.constant 0.142857149 : f32
    %91 = vector.broadcast %cst_22 : f32 to vector<4x1xf32>
    %92 = arith.mulf %90, %91 : vector<4x1xf32>
    %cst_23 = arith.constant 1.000000e-03 : f32
    %93 = vector.broadcast %cst_23 : f32 to vector<4x1xf32>
    %94 = arith.addf %92, %93 : vector<4x1xf32>
    %95 = math.floor %94 : vector<4x1xf32>
    %96 = arith.fptosi %95 : vector<4x1xf32> to vector<4x1xi32>
    %c1_i32_24 = arith.constant 1 : i32
    %97 = vector.broadcast %c1_i32_24 : i32 to vector<4x1xi32>
    %98 = arith.muli %97, %30 : vector<4x1xi32>
    %c6_i32_25 = arith.constant 6 : i32
    %99 = vector.broadcast %c6_i32_25 : i32 to vector<4x1xi32>
    %100 = arith.addi %98, %99 : vector<4x1xi32>
    %101 = arith.sitofp %100 : vector<4x1xi32> to vector<4x1xf32>
    %cst_26 = arith.constant 0.142857149 : f32
    %102 = vector.broadcast %cst_26 : f32 to vector<4x1xf32>
    %103 = arith.mulf %101, %102 : vector<4x1xf32>
    %cst_27 = arith.constant 1.000000e-03 : f32
    %104 = vector.broadcast %cst_27 : f32 to vector<4x1xf32>
    %105 = arith.addf %103, %104 : vector<4x1xf32>
    %106 = math.floor %105 : vector<4x1xf32>
    %107 = arith.fptosi %106 : vector<4x1xf32> to vector<4x1xi32>
    %108 = arith.subi %107, %96 : vector<4x1xi32>
    %cst_28 = arith.constant 0.0357142873 : f32
    %109 = vector.broadcast %cst_28 : f32 to vector<4x1xf32>
    %c3_i32_29 = arith.constant 3 : i32
    %110 = vector.broadcast %c3_i32_29 : i32 to vector<4x1xi32>
    %111 = arith.cmpi eq, %108, %110 : vector<4x1xi32>
    %cst_30 = arith.constant 0.0476190485 : f32
    %112 = vector.broadcast %cst_30 : f32 to vector<4x1xf32>
    %113 = arith.select %111, %112, %109 : vector<4x1xi1>, vector<4x1xf32>
    %c2_i32_31 = arith.constant 2 : i32
    %114 = vector.broadcast %c2_i32_31 : i32 to vector<4x1xi32>
    %115 = arith.cmpi eq, %108, %114 : vector<4x1xi32>
    %cst_32 = arith.constant 0.0714285746 : f32
    %116 = vector.broadcast %cst_32 : f32 to vector<4x1xf32>
    %117 = arith.select %115, %116, %113 : vector<4x1xi1>, vector<4x1xf32>
    %c1_i32_33 = arith.constant 1 : i32
    %118 = vector.broadcast %c1_i32_33 : i32 to vector<4x1xi32>
    %119 = arith.cmpi eq, %108, %118 : vector<4x1xi32>
    %cst_34 = arith.constant 0.142857149 : f32
    %120 = vector.broadcast %cst_34 : f32 to vector<4x1xf32>
    %121 = arith.select %119, %120, %117 : vector<4x1xi1>, vector<4x1xf32>
    %122 = vector.broadcast %96 : vector<4x1xi32> to vector<4x256xi32>
    %123 = arith.cmpi sge, %41, %122 : vector<4x256xi32>
    %124 = vector.broadcast %107 : vector<4x1xi32> to vector<4x256xi32>
    %125 = arith.cmpi slt, %41, %124 : vector<4x256xi32>
    %126 = arith.andi %123, %125 : vector<4x256xi1>
    %cst_35 = arith.constant 0.000000e+00 : f32
    %127 = vector.shape_cast %121 : vector<4x1xf32> to vector<4x1xf32>
    %128 = vector.broadcast %127 : vector<4x1xf32> to vector<4x256xf32>
    %129 = vector.broadcast %cst_35 : f32 to vector<4x256xf32>
    %130 = arith.select %126, %128, %129 : vector<4x256xi1>, vector<4x256xf32>
    %131 = arith.addf %43, %130 : vector<4x256xf32>
    %c1_i32_36 = arith.constant 1 : i32
    %132 = vector.broadcast %c1_i32_36 : i32 to vector<4x1xi32>
    %133 = arith.muli %132, %29 : vector<4x1xi32>
    %134 = arith.sitofp %133 : vector<4x1xi32> to vector<4x1xf32>
    %cst_37 = arith.constant 0.142857149 : f32
    %135 = vector.broadcast %cst_37 : f32 to vector<4x1xf32>
    %136 = arith.mulf %134, %135 : vector<4x1xf32>
    %cst_38 = arith.constant 1.000000e-03 : f32
    %137 = vector.broadcast %cst_38 : f32 to vector<4x1xf32>
    %138 = arith.addf %136, %137 : vector<4x1xf32>
    %139 = math.floor %138 : vector<4x1xf32>
    %140 = arith.fptosi %139 : vector<4x1xf32> to vector<4x1xi32>
    %c2_i32_39 = arith.constant 2 : i32
    %141 = vector.broadcast %c2_i32_39 : i32 to vector<4x1xi32>
    %142 = arith.muli %141, %29 : vector<4x1xi32>
    %c6_i32_40 = arith.constant 6 : i32
    %143 = vector.broadcast %c6_i32_40 : i32 to vector<4x1xi32>
    %144 = arith.addi %142, %143 : vector<4x1xi32>
    %145 = arith.sitofp %144 : vector<4x1xi32> to vector<4x1xf32>
    %cst_41 = arith.constant 0.142857149 : f32
    %146 = vector.broadcast %cst_41 : f32 to vector<4x1xf32>
    %147 = arith.mulf %145, %146 : vector<4x1xf32>
    %cst_42 = arith.constant 1.000000e-03 : f32
    %148 = vector.broadcast %cst_42 : f32 to vector<4x1xf32>
    %149 = arith.addf %147, %148 : vector<4x1xf32>
    %150 = math.floor %149 : vector<4x1xf32>
    %151 = arith.fptosi %150 : vector<4x1xf32> to vector<4x1xi32>
    %152 = arith.subi %151, %140 : vector<4x1xi32>
    %cst_43 = arith.constant 0.0357142873 : f32
    %153 = vector.broadcast %cst_43 : f32 to vector<4x1xf32>
    %c3_i32_44 = arith.constant 3 : i32
    %154 = vector.broadcast %c3_i32_44 : i32 to vector<4x1xi32>
    %155 = arith.cmpi eq, %152, %154 : vector<4x1xi32>
    %cst_45 = arith.constant 0.0476190485 : f32
    %156 = vector.broadcast %cst_45 : f32 to vector<4x1xf32>
    %157 = arith.select %155, %156, %153 : vector<4x1xi1>, vector<4x1xf32>
    %c2_i32_46 = arith.constant 2 : i32
    %158 = vector.broadcast %c2_i32_46 : i32 to vector<4x1xi32>
    %159 = arith.cmpi eq, %152, %158 : vector<4x1xi32>
    %cst_47 = arith.constant 0.0714285746 : f32
    %160 = vector.broadcast %cst_47 : f32 to vector<4x1xf32>
    %161 = arith.select %159, %160, %157 : vector<4x1xi1>, vector<4x1xf32>
    %c1_i32_48 = arith.constant 1 : i32
    %162 = vector.broadcast %c1_i32_48 : i32 to vector<4x1xi32>
    %163 = arith.cmpi eq, %152, %162 : vector<4x1xi32>
    %cst_49 = arith.constant 0.142857149 : f32
    %164 = vector.broadcast %cst_49 : f32 to vector<4x1xf32>
    %165 = arith.select %163, %164, %161 : vector<4x1xi1>, vector<4x1xf32>
    %166 = vector.broadcast %140 : vector<4x1xi32> to vector<4x256xi32>
    %167 = arith.cmpi sge, %38, %166 : vector<4x256xi32>
    %168 = vector.broadcast %151 : vector<4x1xi32> to vector<4x256xi32>
    %169 = arith.cmpi slt, %38, %168 : vector<4x256xi32>
    %170 = arith.andi %167, %169 : vector<4x256xi1>
    %cst_50 = arith.constant 0.000000e+00 : f32
    %171 = vector.shape_cast %165 : vector<4x1xf32> to vector<4x1xf32>
    %172 = vector.broadcast %171 : vector<4x1xf32> to vector<4x256xf32>
    %173 = vector.broadcast %cst_50 : f32 to vector<4x256xf32>
    %174 = arith.select %170, %172, %173 : vector<4x256xi1>, vector<4x256xf32>
    %175 = arith.addf %87, %174 : vector<4x256xf32>
    %c1_i32_51 = arith.constant 1 : i32
    %176 = vector.broadcast %c1_i32_51 : i32 to vector<4x1xi32>
    %177 = arith.muli %176, %30 : vector<4x1xi32>
    %178 = arith.sitofp %177 : vector<4x1xi32> to vector<4x1xf32>
    %cst_52 = arith.constant 0.142857149 : f32
    %179 = vector.broadcast %cst_52 : f32 to vector<4x1xf32>
    %180 = arith.mulf %178, %179 : vector<4x1xf32>
    %cst_53 = arith.constant 1.000000e-03 : f32
    %181 = vector.broadcast %cst_53 : f32 to vector<4x1xf32>
    %182 = arith.addf %180, %181 : vector<4x1xf32>
    %183 = math.floor %182 : vector<4x1xf32>
    %184 = arith.fptosi %183 : vector<4x1xf32> to vector<4x1xi32>
    %c2_i32_54 = arith.constant 2 : i32
    %185 = vector.broadcast %c2_i32_54 : i32 to vector<4x1xi32>
    %186 = arith.muli %185, %30 : vector<4x1xi32>
    %c6_i32_55 = arith.constant 6 : i32
    %187 = vector.broadcast %c6_i32_55 : i32 to vector<4x1xi32>
    %188 = arith.addi %186, %187 : vector<4x1xi32>
    %189 = arith.sitofp %188 : vector<4x1xi32> to vector<4x1xf32>
    %cst_56 = arith.constant 0.142857149 : f32
    %190 = vector.broadcast %cst_56 : f32 to vector<4x1xf32>
    %191 = arith.mulf %189, %190 : vector<4x1xf32>
    %cst_57 = arith.constant 1.000000e-03 : f32
    %192 = vector.broadcast %cst_57 : f32 to vector<4x1xf32>
    %193 = arith.addf %191, %192 : vector<4x1xf32>
    %194 = math.floor %193 : vector<4x1xf32>
    %195 = arith.fptosi %194 : vector<4x1xf32> to vector<4x1xi32>
    %196 = arith.subi %195, %184 : vector<4x1xi32>
    %cst_58 = arith.constant 0.0357142873 : f32
    %197 = vector.broadcast %cst_58 : f32 to vector<4x1xf32>
    %c3_i32_59 = arith.constant 3 : i32
    %198 = vector.broadcast %c3_i32_59 : i32 to vector<4x1xi32>
    %199 = arith.cmpi eq, %196, %198 : vector<4x1xi32>
    %cst_60 = arith.constant 0.0476190485 : f32
    %200 = vector.broadcast %cst_60 : f32 to vector<4x1xf32>
    %201 = arith.select %199, %200, %197 : vector<4x1xi1>, vector<4x1xf32>
    %c2_i32_61 = arith.constant 2 : i32
    %202 = vector.broadcast %c2_i32_61 : i32 to vector<4x1xi32>
    %203 = arith.cmpi eq, %196, %202 : vector<4x1xi32>
    %cst_62 = arith.constant 0.0714285746 : f32
    %204 = vector.broadcast %cst_62 : f32 to vector<4x1xf32>
    %205 = arith.select %203, %204, %201 : vector<4x1xi1>, vector<4x1xf32>
    %c1_i32_63 = arith.constant 1 : i32
    %206 = vector.broadcast %c1_i32_63 : i32 to vector<4x1xi32>
    %207 = arith.cmpi eq, %196, %206 : vector<4x1xi32>
    %cst_64 = arith.constant 0.142857149 : f32
    %208 = vector.broadcast %cst_64 : f32 to vector<4x1xf32>
    %209 = arith.select %207, %208, %205 : vector<4x1xi1>, vector<4x1xf32>
    %210 = vector.broadcast %184 : vector<4x1xi32> to vector<4x256xi32>
    %211 = arith.cmpi sge, %41, %210 : vector<4x256xi32>
    %212 = vector.broadcast %195 : vector<4x1xi32> to vector<4x256xi32>
    %213 = arith.cmpi slt, %41, %212 : vector<4x256xi32>
    %214 = arith.andi %211, %213 : vector<4x256xi1>
    %cst_65 = arith.constant 0.000000e+00 : f32
    %215 = vector.shape_cast %209 : vector<4x1xf32> to vector<4x1xf32>
    %216 = vector.broadcast %215 : vector<4x1xf32> to vector<4x256xf32>
    %217 = vector.broadcast %cst_65 : f32 to vector<4x256xf32>
    %218 = arith.select %214, %216, %217 : vector<4x256xi1>, vector<4x256xf32>
    %219 = arith.addf %131, %218 : vector<4x256xf32>
    %c2_i32_66 = arith.constant 2 : i32
    %220 = vector.broadcast %c2_i32_66 : i32 to vector<4x1xi32>
    %221 = arith.muli %220, %29 : vector<4x1xi32>
    %222 = arith.sitofp %221 : vector<4x1xi32> to vector<4x1xf32>
    %cst_67 = arith.constant 0.142857149 : f32
    %223 = vector.broadcast %cst_67 : f32 to vector<4x1xf32>
    %224 = arith.mulf %222, %223 : vector<4x1xf32>
    %cst_68 = arith.constant 1.000000e-03 : f32
    %225 = vector.broadcast %cst_68 : f32 to vector<4x1xf32>
    %226 = arith.addf %224, %225 : vector<4x1xf32>
    %227 = math.floor %226 : vector<4x1xf32>
    %228 = arith.fptosi %227 : vector<4x1xf32> to vector<4x1xi32>
    %c3_i32_69 = arith.constant 3 : i32
    %229 = vector.broadcast %c3_i32_69 : i32 to vector<4x1xi32>
    %230 = arith.muli %229, %29 : vector<4x1xi32>
    %c6_i32_70 = arith.constant 6 : i32
    %231 = vector.broadcast %c6_i32_70 : i32 to vector<4x1xi32>
    %232 = arith.addi %230, %231 : vector<4x1xi32>
    %233 = arith.sitofp %232 : vector<4x1xi32> to vector<4x1xf32>
    %cst_71 = arith.constant 0.142857149 : f32
    %234 = vector.broadcast %cst_71 : f32 to vector<4x1xf32>
    %235 = arith.mulf %233, %234 : vector<4x1xf32>
    %cst_72 = arith.constant 1.000000e-03 : f32
    %236 = vector.broadcast %cst_72 : f32 to vector<4x1xf32>
    %237 = arith.addf %235, %236 : vector<4x1xf32>
    %238 = math.floor %237 : vector<4x1xf32>
    %239 = arith.fptosi %238 : vector<4x1xf32> to vector<4x1xi32>
    %240 = arith.subi %239, %228 : vector<4x1xi32>
    %cst_73 = arith.constant 0.0357142873 : f32
    %241 = vector.broadcast %cst_73 : f32 to vector<4x1xf32>
    %c3_i32_74 = arith.constant 3 : i32
    %242 = vector.broadcast %c3_i32_74 : i32 to vector<4x1xi32>
    %243 = arith.cmpi eq, %240, %242 : vector<4x1xi32>
    %cst_75 = arith.constant 0.0476190485 : f32
    %244 = vector.broadcast %cst_75 : f32 to vector<4x1xf32>
    %245 = arith.select %243, %244, %241 : vector<4x1xi1>, vector<4x1xf32>
    %c2_i32_76 = arith.constant 2 : i32
    %246 = vector.broadcast %c2_i32_76 : i32 to vector<4x1xi32>
    %247 = arith.cmpi eq, %240, %246 : vector<4x1xi32>
    %cst_77 = arith.constant 0.0714285746 : f32
    %248 = vector.broadcast %cst_77 : f32 to vector<4x1xf32>
    %249 = arith.select %247, %248, %245 : vector<4x1xi1>, vector<4x1xf32>
    %c1_i32_78 = arith.constant 1 : i32
    %250 = vector.broadcast %c1_i32_78 : i32 to vector<4x1xi32>
    %251 = arith.cmpi eq, %240, %250 : vector<4x1xi32>
    %cst_79 = arith.constant 0.142857149 : f32
    %252 = vector.broadcast %cst_79 : f32 to vector<4x1xf32>
    %253 = arith.select %251, %252, %249 : vector<4x1xi1>, vector<4x1xf32>
    %254 = vector.broadcast %228 : vector<4x1xi32> to vector<4x256xi32>
    %255 = arith.cmpi sge, %38, %254 : vector<4x256xi32>
    %256 = vector.broadcast %239 : vector<4x1xi32> to vector<4x256xi32>
    %257 = arith.cmpi slt, %38, %256 : vector<4x256xi32>
    %258 = arith.andi %255, %257 : vector<4x256xi1>
    %cst_80 = arith.constant 0.000000e+00 : f32
    %259 = vector.shape_cast %253 : vector<4x1xf32> to vector<4x1xf32>
    %260 = vector.broadcast %259 : vector<4x1xf32> to vector<4x256xf32>
    %261 = vector.broadcast %cst_80 : f32 to vector<4x256xf32>
    %262 = arith.select %258, %260, %261 : vector<4x256xi1>, vector<4x256xf32>
    %263 = arith.addf %175, %262 : vector<4x256xf32>
    %c2_i32_81 = arith.constant 2 : i32
    %264 = vector.broadcast %c2_i32_81 : i32 to vector<4x1xi32>
    %265 = arith.muli %264, %30 : vector<4x1xi32>
    %266 = arith.sitofp %265 : vector<4x1xi32> to vector<4x1xf32>
    %cst_82 = arith.constant 0.142857149 : f32
    %267 = vector.broadcast %cst_82 : f32 to vector<4x1xf32>
    %268 = arith.mulf %266, %267 : vector<4x1xf32>
    %cst_83 = arith.constant 1.000000e-03 : f32
    %269 = vector.broadcast %cst_83 : f32 to vector<4x1xf32>
    %270 = arith.addf %268, %269 : vector<4x1xf32>
    %271 = math.floor %270 : vector<4x1xf32>
    %272 = arith.fptosi %271 : vector<4x1xf32> to vector<4x1xi32>
    %c3_i32_84 = arith.constant 3 : i32
    %273 = vector.broadcast %c3_i32_84 : i32 to vector<4x1xi32>
    %274 = arith.muli %273, %30 : vector<4x1xi32>
    %c6_i32_85 = arith.constant 6 : i32
    %275 = vector.broadcast %c6_i32_85 : i32 to vector<4x1xi32>
    %276 = arith.addi %274, %275 : vector<4x1xi32>
    %277 = arith.sitofp %276 : vector<4x1xi32> to vector<4x1xf32>
    %cst_86 = arith.constant 0.142857149 : f32
    %278 = vector.broadcast %cst_86 : f32 to vector<4x1xf32>
    %279 = arith.mulf %277, %278 : vector<4x1xf32>
    %cst_87 = arith.constant 1.000000e-03 : f32
    %280 = vector.broadcast %cst_87 : f32 to vector<4x1xf32>
    %281 = arith.addf %279, %280 : vector<4x1xf32>
    %282 = math.floor %281 : vector<4x1xf32>
    %283 = arith.fptosi %282 : vector<4x1xf32> to vector<4x1xi32>
    %284 = arith.subi %283, %272 : vector<4x1xi32>
    %cst_88 = arith.constant 0.0357142873 : f32
    %285 = vector.broadcast %cst_88 : f32 to vector<4x1xf32>
    %c3_i32_89 = arith.constant 3 : i32
    %286 = vector.broadcast %c3_i32_89 : i32 to vector<4x1xi32>
    %287 = arith.cmpi eq, %284, %286 : vector<4x1xi32>
    %cst_90 = arith.constant 0.0476190485 : f32
    %288 = vector.broadcast %cst_90 : f32 to vector<4x1xf32>
    %289 = arith.select %287, %288, %285 : vector<4x1xi1>, vector<4x1xf32>
    %c2_i32_91 = arith.constant 2 : i32
    %290 = vector.broadcast %c2_i32_91 : i32 to vector<4x1xi32>
    %291 = arith.cmpi eq, %284, %290 : vector<4x1xi32>
    %cst_92 = arith.constant 0.0714285746 : f32
    %292 = vector.broadcast %cst_92 : f32 to vector<4x1xf32>
    %293 = arith.select %291, %292, %289 : vector<4x1xi1>, vector<4x1xf32>
    %c1_i32_93 = arith.constant 1 : i32
    %294 = vector.broadcast %c1_i32_93 : i32 to vector<4x1xi32>
    %295 = arith.cmpi eq, %284, %294 : vector<4x1xi32>
    %cst_94 = arith.constant 0.142857149 : f32
    %296 = vector.broadcast %cst_94 : f32 to vector<4x1xf32>
    %297 = arith.select %295, %296, %293 : vector<4x1xi1>, vector<4x1xf32>
    %298 = vector.broadcast %272 : vector<4x1xi32> to vector<4x256xi32>
    %299 = arith.cmpi sge, %41, %298 : vector<4x256xi32>
    %300 = vector.broadcast %283 : vector<4x1xi32> to vector<4x256xi32>
    %301 = arith.cmpi slt, %41, %300 : vector<4x256xi32>
    %302 = arith.andi %299, %301 : vector<4x256xi1>
    %cst_95 = arith.constant 0.000000e+00 : f32
    %303 = vector.shape_cast %297 : vector<4x1xf32> to vector<4x1xf32>
    %304 = vector.broadcast %303 : vector<4x1xf32> to vector<4x256xf32>
    %305 = vector.broadcast %cst_95 : f32 to vector<4x256xf32>
    %306 = arith.select %302, %304, %305 : vector<4x256xi1>, vector<4x256xf32>
    %307 = arith.addf %219, %306 : vector<4x256xf32>
    %c3_i32_96 = arith.constant 3 : i32
    %308 = vector.broadcast %c3_i32_96 : i32 to vector<4x1xi32>
    %309 = arith.muli %308, %29 : vector<4x1xi32>
    %310 = arith.sitofp %309 : vector<4x1xi32> to vector<4x1xf32>
    %cst_97 = arith.constant 0.142857149 : f32
    %311 = vector.broadcast %cst_97 : f32 to vector<4x1xf32>
    %312 = arith.mulf %310, %311 : vector<4x1xf32>
    %cst_98 = arith.constant 1.000000e-03 : f32
    %313 = vector.broadcast %cst_98 : f32 to vector<4x1xf32>
    %314 = arith.addf %312, %313 : vector<4x1xf32>
    %315 = math.floor %314 : vector<4x1xf32>
    %316 = arith.fptosi %315 : vector<4x1xf32> to vector<4x1xi32>
    %c4_i32_99 = arith.constant 4 : i32
    %317 = vector.broadcast %c4_i32_99 : i32 to vector<4x1xi32>
    %318 = arith.muli %317, %29 : vector<4x1xi32>
    %c6_i32_100 = arith.constant 6 : i32
    %319 = vector.broadcast %c6_i32_100 : i32 to vector<4x1xi32>
    %320 = arith.addi %318, %319 : vector<4x1xi32>
    %321 = arith.sitofp %320 : vector<4x1xi32> to vector<4x1xf32>
    %cst_101 = arith.constant 0.142857149 : f32
    %322 = vector.broadcast %cst_101 : f32 to vector<4x1xf32>
    %323 = arith.mulf %321, %322 : vector<4x1xf32>
    %cst_102 = arith.constant 1.000000e-03 : f32
    %324 = vector.broadcast %cst_102 : f32 to vector<4x1xf32>
    %325 = arith.addf %323, %324 : vector<4x1xf32>
    %326 = math.floor %325 : vector<4x1xf32>
    %327 = arith.fptosi %326 : vector<4x1xf32> to vector<4x1xi32>
    %328 = arith.subi %327, %316 : vector<4x1xi32>
    %cst_103 = arith.constant 0.0357142873 : f32
    %329 = vector.broadcast %cst_103 : f32 to vector<4x1xf32>
    %c3_i32_104 = arith.constant 3 : i32
    %330 = vector.broadcast %c3_i32_104 : i32 to vector<4x1xi32>
    %331 = arith.cmpi eq, %328, %330 : vector<4x1xi32>
    %cst_105 = arith.constant 0.0476190485 : f32
    %332 = vector.broadcast %cst_105 : f32 to vector<4x1xf32>
    %333 = arith.select %331, %332, %329 : vector<4x1xi1>, vector<4x1xf32>
    %c2_i32_106 = arith.constant 2 : i32
    %334 = vector.broadcast %c2_i32_106 : i32 to vector<4x1xi32>
    %335 = arith.cmpi eq, %328, %334 : vector<4x1xi32>
    %cst_107 = arith.constant 0.0714285746 : f32
    %336 = vector.broadcast %cst_107 : f32 to vector<4x1xf32>
    %337 = arith.select %335, %336, %333 : vector<4x1xi1>, vector<4x1xf32>
    %c1_i32_108 = arith.constant 1 : i32
    %338 = vector.broadcast %c1_i32_108 : i32 to vector<4x1xi32>
    %339 = arith.cmpi eq, %328, %338 : vector<4x1xi32>
    %cst_109 = arith.constant 0.142857149 : f32
    %340 = vector.broadcast %cst_109 : f32 to vector<4x1xf32>
    %341 = arith.select %339, %340, %337 : vector<4x1xi1>, vector<4x1xf32>
    %342 = vector.broadcast %316 : vector<4x1xi32> to vector<4x256xi32>
    %343 = arith.cmpi sge, %38, %342 : vector<4x256xi32>
    %344 = vector.broadcast %327 : vector<4x1xi32> to vector<4x256xi32>
    %345 = arith.cmpi slt, %38, %344 : vector<4x256xi32>
    %346 = arith.andi %343, %345 : vector<4x256xi1>
    %cst_110 = arith.constant 0.000000e+00 : f32
    %347 = vector.shape_cast %341 : vector<4x1xf32> to vector<4x1xf32>
    %348 = vector.broadcast %347 : vector<4x1xf32> to vector<4x256xf32>
    %349 = vector.broadcast %cst_110 : f32 to vector<4x256xf32>
    %350 = arith.select %346, %348, %349 : vector<4x256xi1>, vector<4x256xf32>
    %351 = arith.addf %263, %350 : vector<4x256xf32>
    %c3_i32_111 = arith.constant 3 : i32
    %352 = vector.broadcast %c3_i32_111 : i32 to vector<4x1xi32>
    %353 = arith.muli %352, %30 : vector<4x1xi32>
    %354 = arith.sitofp %353 : vector<4x1xi32> to vector<4x1xf32>
    %cst_112 = arith.constant 0.142857149 : f32
    %355 = vector.broadcast %cst_112 : f32 to vector<4x1xf32>
    %356 = arith.mulf %354, %355 : vector<4x1xf32>
    %cst_113 = arith.constant 1.000000e-03 : f32
    %357 = vector.broadcast %cst_113 : f32 to vector<4x1xf32>
    %358 = arith.addf %356, %357 : vector<4x1xf32>
    %359 = math.floor %358 : vector<4x1xf32>
    %360 = arith.fptosi %359 : vector<4x1xf32> to vector<4x1xi32>
    %c4_i32_114 = arith.constant 4 : i32
    %361 = vector.broadcast %c4_i32_114 : i32 to vector<4x1xi32>
    %362 = arith.muli %361, %30 : vector<4x1xi32>
    %c6_i32_115 = arith.constant 6 : i32
    %363 = vector.broadcast %c6_i32_115 : i32 to vector<4x1xi32>
    %364 = arith.addi %362, %363 : vector<4x1xi32>
    %365 = arith.sitofp %364 : vector<4x1xi32> to vector<4x1xf32>
    %cst_116 = arith.constant 0.142857149 : f32
    %366 = vector.broadcast %cst_116 : f32 to vector<4x1xf32>
    %367 = arith.mulf %365, %366 : vector<4x1xf32>
    %cst_117 = arith.constant 1.000000e-03 : f32
    %368 = vector.broadcast %cst_117 : f32 to vector<4x1xf32>
    %369 = arith.addf %367, %368 : vector<4x1xf32>
    %370 = math.floor %369 : vector<4x1xf32>
    %371 = arith.fptosi %370 : vector<4x1xf32> to vector<4x1xi32>
    %372 = arith.subi %371, %360 : vector<4x1xi32>
    %cst_118 = arith.constant 0.0357142873 : f32
    %373 = vector.broadcast %cst_118 : f32 to vector<4x1xf32>
    %c3_i32_119 = arith.constant 3 : i32
    %374 = vector.broadcast %c3_i32_119 : i32 to vector<4x1xi32>
    %375 = arith.cmpi eq, %372, %374 : vector<4x1xi32>
    %cst_120 = arith.constant 0.0476190485 : f32
    %376 = vector.broadcast %cst_120 : f32 to vector<4x1xf32>
    %377 = arith.select %375, %376, %373 : vector<4x1xi1>, vector<4x1xf32>
    %c2_i32_121 = arith.constant 2 : i32
    %378 = vector.broadcast %c2_i32_121 : i32 to vector<4x1xi32>
    %379 = arith.cmpi eq, %372, %378 : vector<4x1xi32>
    %cst_122 = arith.constant 0.0714285746 : f32
    %380 = vector.broadcast %cst_122 : f32 to vector<4x1xf32>
    %381 = arith.select %379, %380, %377 : vector<4x1xi1>, vector<4x1xf32>
    %c1_i32_123 = arith.constant 1 : i32
    %382 = vector.broadcast %c1_i32_123 : i32 to vector<4x1xi32>
    %383 = arith.cmpi eq, %372, %382 : vector<4x1xi32>
    %cst_124 = arith.constant 0.142857149 : f32
    %384 = vector.broadcast %cst_124 : f32 to vector<4x1xf32>
    %385 = arith.select %383, %384, %381 : vector<4x1xi1>, vector<4x1xf32>
    %386 = vector.broadcast %360 : vector<4x1xi32> to vector<4x256xi32>
    %387 = arith.cmpi sge, %41, %386 : vector<4x256xi32>
    %388 = vector.broadcast %371 : vector<4x1xi32> to vector<4x256xi32>
    %389 = arith.cmpi slt, %41, %388 : vector<4x256xi32>
    %390 = arith.andi %387, %389 : vector<4x256xi1>
    %cst_125 = arith.constant 0.000000e+00 : f32
    %391 = vector.shape_cast %385 : vector<4x1xf32> to vector<4x1xf32>
    %392 = vector.broadcast %391 : vector<4x1xf32> to vector<4x256xf32>
    %393 = vector.broadcast %cst_125 : f32 to vector<4x256xf32>
    %394 = arith.select %390, %392, %393 : vector<4x256xi1>, vector<4x256xf32>
    %395 = arith.addf %307, %394 : vector<4x256xf32>
    %c4_i32_126 = arith.constant 4 : i32
    %396 = vector.broadcast %c4_i32_126 : i32 to vector<4x1xi32>
    %397 = arith.muli %396, %29 : vector<4x1xi32>
    %398 = arith.sitofp %397 : vector<4x1xi32> to vector<4x1xf32>
    %cst_127 = arith.constant 0.142857149 : f32
    %399 = vector.broadcast %cst_127 : f32 to vector<4x1xf32>
    %400 = arith.mulf %398, %399 : vector<4x1xf32>
    %cst_128 = arith.constant 1.000000e-03 : f32
    %401 = vector.broadcast %cst_128 : f32 to vector<4x1xf32>
    %402 = arith.addf %400, %401 : vector<4x1xf32>
    %403 = math.floor %402 : vector<4x1xf32>
    %404 = arith.fptosi %403 : vector<4x1xf32> to vector<4x1xi32>
    %c5_i32_129 = arith.constant 5 : i32
    %405 = vector.broadcast %c5_i32_129 : i32 to vector<4x1xi32>
    %406 = arith.muli %405, %29 : vector<4x1xi32>
    %c6_i32_130 = arith.constant 6 : i32
    %407 = vector.broadcast %c6_i32_130 : i32 to vector<4x1xi32>
    %408 = arith.addi %406, %407 : vector<4x1xi32>
    %409 = arith.sitofp %408 : vector<4x1xi32> to vector<4x1xf32>
    %cst_131 = arith.constant 0.142857149 : f32
    %410 = vector.broadcast %cst_131 : f32 to vector<4x1xf32>
    %411 = arith.mulf %409, %410 : vector<4x1xf32>
    %cst_132 = arith.constant 1.000000e-03 : f32
    %412 = vector.broadcast %cst_132 : f32 to vector<4x1xf32>
    %413 = arith.addf %411, %412 : vector<4x1xf32>
    %414 = math.floor %413 : vector<4x1xf32>
    %415 = arith.fptosi %414 : vector<4x1xf32> to vector<4x1xi32>
    %416 = arith.subi %415, %404 : vector<4x1xi32>
    %cst_133 = arith.constant 0.0357142873 : f32
    %417 = vector.broadcast %cst_133 : f32 to vector<4x1xf32>
    %c3_i32_134 = arith.constant 3 : i32
    %418 = vector.broadcast %c3_i32_134 : i32 to vector<4x1xi32>
    %419 = arith.cmpi eq, %416, %418 : vector<4x1xi32>
    %cst_135 = arith.constant 0.0476190485 : f32
    %420 = vector.broadcast %cst_135 : f32 to vector<4x1xf32>
    %421 = arith.select %419, %420, %417 : vector<4x1xi1>, vector<4x1xf32>
    %c2_i32_136 = arith.constant 2 : i32
    %422 = vector.broadcast %c2_i32_136 : i32 to vector<4x1xi32>
    %423 = arith.cmpi eq, %416, %422 : vector<4x1xi32>
    %cst_137 = arith.constant 0.0714285746 : f32
    %424 = vector.broadcast %cst_137 : f32 to vector<4x1xf32>
    %425 = arith.select %423, %424, %421 : vector<4x1xi1>, vector<4x1xf32>
    %c1_i32_138 = arith.constant 1 : i32
    %426 = vector.broadcast %c1_i32_138 : i32 to vector<4x1xi32>
    %427 = arith.cmpi eq, %416, %426 : vector<4x1xi32>
    %cst_139 = arith.constant 0.142857149 : f32
    %428 = vector.broadcast %cst_139 : f32 to vector<4x1xf32>
    %429 = arith.select %427, %428, %425 : vector<4x1xi1>, vector<4x1xf32>
    %430 = vector.broadcast %404 : vector<4x1xi32> to vector<4x256xi32>
    %431 = arith.cmpi sge, %38, %430 : vector<4x256xi32>
    %432 = vector.broadcast %415 : vector<4x1xi32> to vector<4x256xi32>
    %433 = arith.cmpi slt, %38, %432 : vector<4x256xi32>
    %434 = arith.andi %431, %433 : vector<4x256xi1>
    %cst_140 = arith.constant 0.000000e+00 : f32
    %435 = vector.shape_cast %429 : vector<4x1xf32> to vector<4x1xf32>
    %436 = vector.broadcast %435 : vector<4x1xf32> to vector<4x256xf32>
    %437 = vector.broadcast %cst_140 : f32 to vector<4x256xf32>
    %438 = arith.select %434, %436, %437 : vector<4x256xi1>, vector<4x256xf32>
    %439 = arith.addf %351, %438 : vector<4x256xf32>
    %c4_i32_141 = arith.constant 4 : i32
    %440 = vector.broadcast %c4_i32_141 : i32 to vector<4x1xi32>
    %441 = arith.muli %440, %30 : vector<4x1xi32>
    %442 = arith.sitofp %441 : vector<4x1xi32> to vector<4x1xf32>
    %cst_142 = arith.constant 0.142857149 : f32
    %443 = vector.broadcast %cst_142 : f32 to vector<4x1xf32>
    %444 = arith.mulf %442, %443 : vector<4x1xf32>
    %cst_143 = arith.constant 1.000000e-03 : f32
    %445 = vector.broadcast %cst_143 : f32 to vector<4x1xf32>
    %446 = arith.addf %444, %445 : vector<4x1xf32>
    %447 = math.floor %446 : vector<4x1xf32>
    %448 = arith.fptosi %447 : vector<4x1xf32> to vector<4x1xi32>
    %c5_i32_144 = arith.constant 5 : i32
    %449 = vector.broadcast %c5_i32_144 : i32 to vector<4x1xi32>
    %450 = arith.muli %449, %30 : vector<4x1xi32>
    %c6_i32_145 = arith.constant 6 : i32
    %451 = vector.broadcast %c6_i32_145 : i32 to vector<4x1xi32>
    %452 = arith.addi %450, %451 : vector<4x1xi32>
    %453 = arith.sitofp %452 : vector<4x1xi32> to vector<4x1xf32>
    %cst_146 = arith.constant 0.142857149 : f32
    %454 = vector.broadcast %cst_146 : f32 to vector<4x1xf32>
    %455 = arith.mulf %453, %454 : vector<4x1xf32>
    %cst_147 = arith.constant 1.000000e-03 : f32
    %456 = vector.broadcast %cst_147 : f32 to vector<4x1xf32>
    %457 = arith.addf %455, %456 : vector<4x1xf32>
    %458 = math.floor %457 : vector<4x1xf32>
    %459 = arith.fptosi %458 : vector<4x1xf32> to vector<4x1xi32>
    %460 = arith.subi %459, %448 : vector<4x1xi32>
    %cst_148 = arith.constant 0.0357142873 : f32
    %461 = vector.broadcast %cst_148 : f32 to vector<4x1xf32>
    %c3_i32_149 = arith.constant 3 : i32
    %462 = vector.broadcast %c3_i32_149 : i32 to vector<4x1xi32>
    %463 = arith.cmpi eq, %460, %462 : vector<4x1xi32>
    %cst_150 = arith.constant 0.0476190485 : f32
    %464 = vector.broadcast %cst_150 : f32 to vector<4x1xf32>
    %465 = arith.select %463, %464, %461 : vector<4x1xi1>, vector<4x1xf32>
    %c2_i32_151 = arith.constant 2 : i32
    %466 = vector.broadcast %c2_i32_151 : i32 to vector<4x1xi32>
    %467 = arith.cmpi eq, %460, %466 : vector<4x1xi32>
    %cst_152 = arith.constant 0.0714285746 : f32
    %468 = vector.broadcast %cst_152 : f32 to vector<4x1xf32>
    %469 = arith.select %467, %468, %465 : vector<4x1xi1>, vector<4x1xf32>
    %c1_i32_153 = arith.constant 1 : i32
    %470 = vector.broadcast %c1_i32_153 : i32 to vector<4x1xi32>
    %471 = arith.cmpi eq, %460, %470 : vector<4x1xi32>
    %cst_154 = arith.constant 0.142857149 : f32
    %472 = vector.broadcast %cst_154 : f32 to vector<4x1xf32>
    %473 = arith.select %471, %472, %469 : vector<4x1xi1>, vector<4x1xf32>
    %474 = vector.broadcast %448 : vector<4x1xi32> to vector<4x256xi32>
    %475 = arith.cmpi sge, %41, %474 : vector<4x256xi32>
    %476 = vector.broadcast %459 : vector<4x1xi32> to vector<4x256xi32>
    %477 = arith.cmpi slt, %41, %476 : vector<4x256xi32>
    %478 = arith.andi %475, %477 : vector<4x256xi1>
    %cst_155 = arith.constant 0.000000e+00 : f32
    %479 = vector.shape_cast %473 : vector<4x1xf32> to vector<4x1xf32>
    %480 = vector.broadcast %479 : vector<4x1xf32> to vector<4x256xf32>
    %481 = vector.broadcast %cst_155 : f32 to vector<4x256xf32>
    %482 = arith.select %478, %480, %481 : vector<4x256xi1>, vector<4x256xf32>
    %483 = arith.addf %395, %482 : vector<4x256xf32>
    %c5_i32_156 = arith.constant 5 : i32
    %484 = vector.broadcast %c5_i32_156 : i32 to vector<4x1xi32>
    %485 = arith.muli %484, %29 : vector<4x1xi32>
    %486 = arith.sitofp %485 : vector<4x1xi32> to vector<4x1xf32>
    %cst_157 = arith.constant 0.142857149 : f32
    %487 = vector.broadcast %cst_157 : f32 to vector<4x1xf32>
    %488 = arith.mulf %486, %487 : vector<4x1xf32>
    %cst_158 = arith.constant 1.000000e-03 : f32
    %489 = vector.broadcast %cst_158 : f32 to vector<4x1xf32>
    %490 = arith.addf %488, %489 : vector<4x1xf32>
    %491 = math.floor %490 : vector<4x1xf32>
    %492 = arith.fptosi %491 : vector<4x1xf32> to vector<4x1xi32>
    %c6_i32_159 = arith.constant 6 : i32
    %493 = vector.broadcast %c6_i32_159 : i32 to vector<4x1xi32>
    %494 = arith.muli %493, %29 : vector<4x1xi32>
    %c6_i32_160 = arith.constant 6 : i32
    %495 = vector.broadcast %c6_i32_160 : i32 to vector<4x1xi32>
    %496 = arith.addi %494, %495 : vector<4x1xi32>
    %497 = arith.sitofp %496 : vector<4x1xi32> to vector<4x1xf32>
    %cst_161 = arith.constant 0.142857149 : f32
    %498 = vector.broadcast %cst_161 : f32 to vector<4x1xf32>
    %499 = arith.mulf %497, %498 : vector<4x1xf32>
    %cst_162 = arith.constant 1.000000e-03 : f32
    %500 = vector.broadcast %cst_162 : f32 to vector<4x1xf32>
    %501 = arith.addf %499, %500 : vector<4x1xf32>
    %502 = math.floor %501 : vector<4x1xf32>
    %503 = arith.fptosi %502 : vector<4x1xf32> to vector<4x1xi32>
    %504 = arith.subi %503, %492 : vector<4x1xi32>
    %cst_163 = arith.constant 0.0357142873 : f32
    %505 = vector.broadcast %cst_163 : f32 to vector<4x1xf32>
    %c3_i32_164 = arith.constant 3 : i32
    %506 = vector.broadcast %c3_i32_164 : i32 to vector<4x1xi32>
    %507 = arith.cmpi eq, %504, %506 : vector<4x1xi32>
    %cst_165 = arith.constant 0.0476190485 : f32
    %508 = vector.broadcast %cst_165 : f32 to vector<4x1xf32>
    %509 = arith.select %507, %508, %505 : vector<4x1xi1>, vector<4x1xf32>
    %c2_i32_166 = arith.constant 2 : i32
    %510 = vector.broadcast %c2_i32_166 : i32 to vector<4x1xi32>
    %511 = arith.cmpi eq, %504, %510 : vector<4x1xi32>
    %cst_167 = arith.constant 0.0714285746 : f32
    %512 = vector.broadcast %cst_167 : f32 to vector<4x1xf32>
    %513 = arith.select %511, %512, %509 : vector<4x1xi1>, vector<4x1xf32>
    %c1_i32_168 = arith.constant 1 : i32
    %514 = vector.broadcast %c1_i32_168 : i32 to vector<4x1xi32>
    %515 = arith.cmpi eq, %504, %514 : vector<4x1xi32>
    %cst_169 = arith.constant 0.142857149 : f32
    %516 = vector.broadcast %cst_169 : f32 to vector<4x1xf32>
    %517 = arith.select %515, %516, %513 : vector<4x1xi1>, vector<4x1xf32>
    %518 = vector.broadcast %492 : vector<4x1xi32> to vector<4x256xi32>
    %519 = arith.cmpi sge, %38, %518 : vector<4x256xi32>
    %520 = vector.broadcast %503 : vector<4x1xi32> to vector<4x256xi32>
    %521 = arith.cmpi slt, %38, %520 : vector<4x256xi32>
    %522 = arith.andi %519, %521 : vector<4x256xi1>
    %cst_170 = arith.constant 0.000000e+00 : f32
    %523 = vector.shape_cast %517 : vector<4x1xf32> to vector<4x1xf32>
    %524 = vector.broadcast %523 : vector<4x1xf32> to vector<4x256xf32>
    %525 = vector.broadcast %cst_170 : f32 to vector<4x256xf32>
    %526 = arith.select %522, %524, %525 : vector<4x256xi1>, vector<4x256xf32>
    %527 = arith.addf %439, %526 : vector<4x256xf32>
    %c5_i32_171 = arith.constant 5 : i32
    %528 = vector.broadcast %c5_i32_171 : i32 to vector<4x1xi32>
    %529 = arith.muli %528, %30 : vector<4x1xi32>
    %530 = arith.sitofp %529 : vector<4x1xi32> to vector<4x1xf32>
    %cst_172 = arith.constant 0.142857149 : f32
    %531 = vector.broadcast %cst_172 : f32 to vector<4x1xf32>
    %532 = arith.mulf %530, %531 : vector<4x1xf32>
    %cst_173 = arith.constant 1.000000e-03 : f32
    %533 = vector.broadcast %cst_173 : f32 to vector<4x1xf32>
    %534 = arith.addf %532, %533 : vector<4x1xf32>
    %535 = math.floor %534 : vector<4x1xf32>
    %536 = arith.fptosi %535 : vector<4x1xf32> to vector<4x1xi32>
    %c6_i32_174 = arith.constant 6 : i32
    %537 = vector.broadcast %c6_i32_174 : i32 to vector<4x1xi32>
    %538 = arith.muli %537, %30 : vector<4x1xi32>
    %c6_i32_175 = arith.constant 6 : i32
    %539 = vector.broadcast %c6_i32_175 : i32 to vector<4x1xi32>
    %540 = arith.addi %538, %539 : vector<4x1xi32>
    %541 = arith.sitofp %540 : vector<4x1xi32> to vector<4x1xf32>
    %cst_176 = arith.constant 0.142857149 : f32
    %542 = vector.broadcast %cst_176 : f32 to vector<4x1xf32>
    %543 = arith.mulf %541, %542 : vector<4x1xf32>
    %cst_177 = arith.constant 1.000000e-03 : f32
    %544 = vector.broadcast %cst_177 : f32 to vector<4x1xf32>
    %545 = arith.addf %543, %544 : vector<4x1xf32>
    %546 = math.floor %545 : vector<4x1xf32>
    %547 = arith.fptosi %546 : vector<4x1xf32> to vector<4x1xi32>
    %548 = arith.subi %547, %536 : vector<4x1xi32>
    %cst_178 = arith.constant 0.0357142873 : f32
    %549 = vector.broadcast %cst_178 : f32 to vector<4x1xf32>
    %c3_i32_179 = arith.constant 3 : i32
    %550 = vector.broadcast %c3_i32_179 : i32 to vector<4x1xi32>
    %551 = arith.cmpi eq, %548, %550 : vector<4x1xi32>
    %cst_180 = arith.constant 0.0476190485 : f32
    %552 = vector.broadcast %cst_180 : f32 to vector<4x1xf32>
    %553 = arith.select %551, %552, %549 : vector<4x1xi1>, vector<4x1xf32>
    %c2_i32_181 = arith.constant 2 : i32
    %554 = vector.broadcast %c2_i32_181 : i32 to vector<4x1xi32>
    %555 = arith.cmpi eq, %548, %554 : vector<4x1xi32>
    %cst_182 = arith.constant 0.0714285746 : f32
    %556 = vector.broadcast %cst_182 : f32 to vector<4x1xf32>
    %557 = arith.select %555, %556, %553 : vector<4x1xi1>, vector<4x1xf32>
    %c1_i32_183 = arith.constant 1 : i32
    %558 = vector.broadcast %c1_i32_183 : i32 to vector<4x1xi32>
    %559 = arith.cmpi eq, %548, %558 : vector<4x1xi32>
    %cst_184 = arith.constant 0.142857149 : f32
    %560 = vector.broadcast %cst_184 : f32 to vector<4x1xf32>
    %561 = arith.select %559, %560, %557 : vector<4x1xi1>, vector<4x1xf32>
    %562 = vector.broadcast %536 : vector<4x1xi32> to vector<4x256xi32>
    %563 = arith.cmpi sge, %41, %562 : vector<4x256xi32>
    %564 = vector.broadcast %547 : vector<4x1xi32> to vector<4x256xi32>
    %565 = arith.cmpi slt, %41, %564 : vector<4x256xi32>
    %566 = arith.andi %563, %565 : vector<4x256xi1>
    %cst_185 = arith.constant 0.000000e+00 : f32
    %567 = vector.shape_cast %561 : vector<4x1xf32> to vector<4x1xf32>
    %568 = vector.broadcast %567 : vector<4x1xf32> to vector<4x256xf32>
    %569 = vector.broadcast %cst_185 : f32 to vector<4x256xf32>
    %570 = arith.select %566, %568, %569 : vector<4x256xi1>, vector<4x256xf32>
    %571 = arith.addf %483, %570 : vector<4x256xf32>
    %c6_i32_186 = arith.constant 6 : i32
    %572 = vector.broadcast %c6_i32_186 : i32 to vector<4x1xi32>
    %573 = arith.muli %572, %29 : vector<4x1xi32>
    %574 = arith.sitofp %573 : vector<4x1xi32> to vector<4x1xf32>
    %cst_187 = arith.constant 0.142857149 : f32
    %575 = vector.broadcast %cst_187 : f32 to vector<4x1xf32>
    %576 = arith.mulf %574, %575 : vector<4x1xf32>
    %cst_188 = arith.constant 1.000000e-03 : f32
    %577 = vector.broadcast %cst_188 : f32 to vector<4x1xf32>
    %578 = arith.addf %576, %577 : vector<4x1xf32>
    %579 = math.floor %578 : vector<4x1xf32>
    %580 = arith.fptosi %579 : vector<4x1xf32> to vector<4x1xi32>
    %c7_i32 = arith.constant 7 : i32
    %581 = vector.broadcast %c7_i32 : i32 to vector<4x1xi32>
    %582 = arith.muli %581, %29 : vector<4x1xi32>
    %c6_i32_189 = arith.constant 6 : i32
    %583 = vector.broadcast %c6_i32_189 : i32 to vector<4x1xi32>
    %584 = arith.addi %582, %583 : vector<4x1xi32>
    %585 = arith.sitofp %584 : vector<4x1xi32> to vector<4x1xf32>
    %cst_190 = arith.constant 0.142857149 : f32
    %586 = vector.broadcast %cst_190 : f32 to vector<4x1xf32>
    %587 = arith.mulf %585, %586 : vector<4x1xf32>
    %cst_191 = arith.constant 1.000000e-03 : f32
    %588 = vector.broadcast %cst_191 : f32 to vector<4x1xf32>
    %589 = arith.addf %587, %588 : vector<4x1xf32>
    %590 = math.floor %589 : vector<4x1xf32>
    %591 = arith.fptosi %590 : vector<4x1xf32> to vector<4x1xi32>
    %592 = arith.subi %591, %580 : vector<4x1xi32>
    %cst_192 = arith.constant 0.0357142873 : f32
    %593 = vector.broadcast %cst_192 : f32 to vector<4x1xf32>
    %c3_i32_193 = arith.constant 3 : i32
    %594 = vector.broadcast %c3_i32_193 : i32 to vector<4x1xi32>
    %595 = arith.cmpi eq, %592, %594 : vector<4x1xi32>
    %cst_194 = arith.constant 0.0476190485 : f32
    %596 = vector.broadcast %cst_194 : f32 to vector<4x1xf32>
    %597 = arith.select %595, %596, %593 : vector<4x1xi1>, vector<4x1xf32>
    %c2_i32_195 = arith.constant 2 : i32
    %598 = vector.broadcast %c2_i32_195 : i32 to vector<4x1xi32>
    %599 = arith.cmpi eq, %592, %598 : vector<4x1xi32>
    %cst_196 = arith.constant 0.0714285746 : f32
    %600 = vector.broadcast %cst_196 : f32 to vector<4x1xf32>
    %601 = arith.select %599, %600, %597 : vector<4x1xi1>, vector<4x1xf32>
    %c1_i32_197 = arith.constant 1 : i32
    %602 = vector.broadcast %c1_i32_197 : i32 to vector<4x1xi32>
    %603 = arith.cmpi eq, %592, %602 : vector<4x1xi32>
    %cst_198 = arith.constant 0.142857149 : f32
    %604 = vector.broadcast %cst_198 : f32 to vector<4x1xf32>
    %605 = arith.select %603, %604, %601 : vector<4x1xi1>, vector<4x1xf32>
    %606 = vector.broadcast %580 : vector<4x1xi32> to vector<4x256xi32>
    %607 = arith.cmpi sge, %38, %606 : vector<4x256xi32>
    %608 = vector.broadcast %591 : vector<4x1xi32> to vector<4x256xi32>
    %609 = arith.cmpi slt, %38, %608 : vector<4x256xi32>
    %610 = arith.andi %607, %609 : vector<4x256xi1>
    %cst_199 = arith.constant 0.000000e+00 : f32
    %611 = vector.shape_cast %605 : vector<4x1xf32> to vector<4x1xf32>
    %612 = vector.broadcast %611 : vector<4x1xf32> to vector<4x256xf32>
    %613 = vector.broadcast %cst_199 : f32 to vector<4x256xf32>
    %614 = arith.select %610, %612, %613 : vector<4x256xi1>, vector<4x256xf32>
    %615 = arith.addf %527, %614 : vector<4x256xf32>
    %c6_i32_200 = arith.constant 6 : i32
    %616 = vector.broadcast %c6_i32_200 : i32 to vector<4x1xi32>
    %617 = arith.muli %616, %30 : vector<4x1xi32>
    %618 = arith.sitofp %617 : vector<4x1xi32> to vector<4x1xf32>
    %cst_201 = arith.constant 0.142857149 : f32
    %619 = vector.broadcast %cst_201 : f32 to vector<4x1xf32>
    %620 = arith.mulf %618, %619 : vector<4x1xf32>
    %cst_202 = arith.constant 1.000000e-03 : f32
    %621 = vector.broadcast %cst_202 : f32 to vector<4x1xf32>
    %622 = arith.addf %620, %621 : vector<4x1xf32>
    %623 = math.floor %622 : vector<4x1xf32>
    %624 = arith.fptosi %623 : vector<4x1xf32> to vector<4x1xi32>
    %c7_i32_203 = arith.constant 7 : i32
    %625 = vector.broadcast %c7_i32_203 : i32 to vector<4x1xi32>
    %626 = arith.muli %625, %30 : vector<4x1xi32>
    %c6_i32_204 = arith.constant 6 : i32
    %627 = vector.broadcast %c6_i32_204 : i32 to vector<4x1xi32>
    %628 = arith.addi %626, %627 : vector<4x1xi32>
    %629 = arith.sitofp %628 : vector<4x1xi32> to vector<4x1xf32>
    %cst_205 = arith.constant 0.142857149 : f32
    %630 = vector.broadcast %cst_205 : f32 to vector<4x1xf32>
    %631 = arith.mulf %629, %630 : vector<4x1xf32>
    %cst_206 = arith.constant 1.000000e-03 : f32
    %632 = vector.broadcast %cst_206 : f32 to vector<4x1xf32>
    %633 = arith.addf %631, %632 : vector<4x1xf32>
    %634 = math.floor %633 : vector<4x1xf32>
    %635 = arith.fptosi %634 : vector<4x1xf32> to vector<4x1xi32>
    %636 = arith.subi %635, %624 : vector<4x1xi32>
    %cst_207 = arith.constant 0.0357142873 : f32
    %637 = vector.broadcast %cst_207 : f32 to vector<4x1xf32>
    %c3_i32_208 = arith.constant 3 : i32
    %638 = vector.broadcast %c3_i32_208 : i32 to vector<4x1xi32>
    %639 = arith.cmpi eq, %636, %638 : vector<4x1xi32>
    %cst_209 = arith.constant 0.0476190485 : f32
    %640 = vector.broadcast %cst_209 : f32 to vector<4x1xf32>
    %641 = arith.select %639, %640, %637 : vector<4x1xi1>, vector<4x1xf32>
    %c2_i32_210 = arith.constant 2 : i32
    %642 = vector.broadcast %c2_i32_210 : i32 to vector<4x1xi32>
    %643 = arith.cmpi eq, %636, %642 : vector<4x1xi32>
    %cst_211 = arith.constant 0.0714285746 : f32
    %644 = vector.broadcast %cst_211 : f32 to vector<4x1xf32>
    %645 = arith.select %643, %644, %641 : vector<4x1xi1>, vector<4x1xf32>
    %c1_i32_212 = arith.constant 1 : i32
    %646 = vector.broadcast %c1_i32_212 : i32 to vector<4x1xi32>
    %647 = arith.cmpi eq, %636, %646 : vector<4x1xi32>
    %cst_213 = arith.constant 0.142857149 : f32
    %648 = vector.broadcast %cst_213 : f32 to vector<4x1xf32>
    %649 = arith.select %647, %648, %645 : vector<4x1xi1>, vector<4x1xf32>
    %650 = vector.broadcast %624 : vector<4x1xi32> to vector<4x256xi32>
    %651 = arith.cmpi sge, %41, %650 : vector<4x256xi32>
    %652 = vector.broadcast %635 : vector<4x1xi32> to vector<4x256xi32>
    %653 = arith.cmpi slt, %41, %652 : vector<4x256xi32>
    %654 = arith.andi %651, %653 : vector<4x256xi1>
    %cst_214 = arith.constant 0.000000e+00 : f32
    %655 = vector.shape_cast %649 : vector<4x1xf32> to vector<4x1xf32>
    %656 = vector.broadcast %655 : vector<4x1xf32> to vector<4x256xf32>
    %657 = vector.broadcast %cst_214 : f32 to vector<4x256xf32>
    %658 = arith.select %654, %656, %657 : vector<4x256xi1>, vector<4x256xf32>
    %659 = arith.addf %571, %658 : vector<4x256xf32>
    %660 = arith.mulf %615, %659 : vector<4x256xf32>
    %c0_215 = arith.constant 0 : index
    %c0_216 = arith.constant 0 : index
    %661 = vector.load %arg1[%c0_215, %c0_216] : memref<72x256xf32, #tpu.memory_space<vmem>>, vector<8x256xf32>
    %cst_217 = arith.constant dense<0.000000e+00> : vector<4x8xf32>
    %662 = tpu.matmul %660, %661, %cst_217 {dimension_numbers = #tpu.dot_dimension_numbers<[1], [1], [0], [0], [0, 0, 1, 0], [], []>, precision = #tpu.contract_precision<fp32>} : vector<4x256xf32>, vector<8x256xf32>, vector<4x8xf32> -> vector<4x8xf32>
    %c0_218 = arith.constant 0 : index
    %c0_219 = arith.constant 0 : index
    %663 = vector.load %arg2[%c0_218, %c0_219] : memref<4x8xf32, #tpu.memory_space<vmem>>, vector<4x8xf32>
    tpu.vector_store %arg2[%c0_218, %c0_219], %662 {strides = array<i32>} : memref<4x8xf32, #tpu.memory_space<vmem>>, vector<4x8xf32>,
    return
  }
}

</mosaic_0001>

<llo_original>
// kernel: tpu_custom_call.1
$region0: #{tpu_custom_call.1}
  #allocation0 [shape = 'u32[]', space=smem, size = 0x4, offset = 0x4, fixed_abs, tag = 'smem constant byte address 0x4 - core index']
  #allocation1 [shape = 'u32[72,128]{1,0:T(1,128)}', space=vmem, size = 0x9000, scoped, tag = 'internal scratch']
  %s0 = inlined_call_operand.hbm [shape: s32[4,4], index: 0, kind: input, shape index: {}]
  %s1 = inlined_call_operand.hbm [shape: f32[72,256], index: 1, kind: input, shape index: {}]
  %s2 = inlined_call_operand.hbm [shape: f32[4,8], index: 2, kind: output, shape index: {}]
  %s3 = sld [smem:[#allocation0]]
  $region26: #{tpu_custom_call.1} parent=0
    _
  %s5 = ssub.s32 1, %s3
  %s6 = scalar_select 0, %s5, %s3
  $region1: #{tpu_custom_call.1} parent=0
    #allocation2 [shape = 'u8[2048]{0}', space=vmem, size = 0x800, scoped, tag = 'input window, operand 0, single buffered']
    #allocation3 [shape = 's32[1]{0}', space=sflag, size = 0x4, scoped, tag = 'scoped memory for tpu_custom_call.1']
    #allocation4 [shape = 's32[1]{0}', space=sflag, size = 0x4, scoped, tag = 'scoped memory for tpu_custom_call.1']
    #allocation5 [shape = 'u8[73728]{0}', space=vmem, size = 0x12000, scoped, tag = 'input window, operand 1, single buffered']
    #allocation6 [shape = 's32[1]{0}', space=sflag, size = 0x4, scoped, tag = 'scoped memory for tpu_custom_call.1']
    #allocation7 [shape = 'u8[2048]{0}', space=vmem, size = 0x800, scoped, tag = 'output window, operand 0, single buffered']
    %7 = vsyncpa [#allocation3], 0
    %8 = vsyncpa [#allocation6], 0
    %9 = vsyncpa [#allocation4], 0
    // Predicated region
    $region2: #{tpu_custom_call.1} parent=1 // pred_check
      _
    $region3: #{tpu_custom_call.1} parent=1 // pred_check_branch
      %11 = sbr.rel (0) target = $region5
    $region4: #{tpu_custom_call.1} parent=1 // pred_region
      %13 = vsyncadd [#allocation3], 0
      %s15 = sshll.u32 %s0, 4
      %s16 = int_to_ptr.hbm [resolvable:$true] %s15
      %s17 = sshll.u32 [#allocation2], 4
      %s18 = int_to_ptr.vmem [resolvable:$true] %s17
      %20 = dma.hbm_to_vmem [thread:$0]  %s16, 64, %s18, [#allocation3]
    $region5: #{tpu_custom_call.1} parent=1 // pred_fallthru
      _
    // Predicated region
    $region6: #{tpu_custom_call.1} parent=1 // pred_check
      _
    $region7: #{tpu_custom_call.1} parent=1 // pred_check_branch
      %22 = sbr.rel (0) target = $region9
    $region8: #{tpu_custom_call.1} parent=1 // pred_region
      %24 = vsyncadd [#allocation6], 0
      %s25 = sshll.u32 %s1, 4
      %s26 = int_to_ptr.hbm [resolvable:$true] %s25
      %s27 = sshll.u32 [#allocation5], 4
      %s28 = int_to_ptr.vmem [resolvable:$true] %s27
      %33 = dma.hbm_to_vmem [thread:$0]  %s26, 2304, %s28, [#allocation6], 256, 256, 16
    $region9: #{tpu_custom_call.1} parent=1 // pred_fallthru
      _
    // Predicated region
    $region10: #{tpu_custom_call.1} parent=1 // pred_check
      _
    $region11: #{tpu_custom_call.1} parent=1 // pred_check_branch
      %35 = sbr.rel (0) target = $region13
    $region12: #{tpu_custom_call.1} parent=1 // pred_region
      %37 = dma.done [#allocation3], 64
    $region13: #{tpu_custom_call.1} parent=1 // pred_fallthru
      _
    // Predicated region
    $region14: #{tpu_custom_call.1} parent=1 // pred_check
      _
    $region15: #{tpu_custom_call.1} parent=1 // pred_check_branch
      %39 = sbr.rel (0) target = $region17
    $region16: #{tpu_custom_call.1} parent=1 // pred_region
      %41 = dma.done [#allocation6], 2304
    $region17: #{tpu_custom_call.1} parent=1 // pred_fallthru
      _
    %v42 = vld [vmem:[#allocation2] sm:$0xf]
    %v43 = vshra.s32 %v42, 5
    %vm44 = vcmp.gt.s32.totalorder %v43, 0
    %v45 = vsel %vm44, %v43, 0
    %vm46 = vcmp.lt.s32.totalorder %v45, 15
    %v47 = vsel %vm46, %v45, 15
    %v48 = vadd.s32 %v43, 1
    %v49 = vadd.s32 %v47, 1
    %50 = vrot.lane.b32.xlu0 %v48, 126
    %v51 = vpop.permute.xlu0 %50
    %vm52 = vcmp.gt.s32.totalorder %v49, %v51
    %v53 = vsel %vm52, %v49, %v51
    %vm54 = vcmp.lt.s32.totalorder %v53, 16
    %v55 = vsel %vm54, %v53, 16
    %v56 = vsub.s32 %v55, %v47
    %v57 = vlaneseq
    %v58 = vand.u32 %v57, 127
    %v59 = vadd.s32 %v58, 128
    %v60 = vshra.s32 %v58, 4
    %v61 = vshra.s32 %v59, 4
    %v62 = vand.u32 %v58, 15
    %v63 = vand.u32 %v59, 15
    %64 = vset.pattern.permute.xlu0 0
    %65 = vperm.xlu0 %64, %v47
    %v66 = vpop.permute.xlu0 %65
    %v67 = vsub.s32 %v60, %v66
    %v68 = vsub.s32 %v61, %v66
    %69 = vset.pattern.permute.xlu0 1
    %70 = vperm.xlu0 %69, %v47
    %v71 = vpop.permute.xlu0 %70
    %v72 = vsub.s32 %v62, %v71
    %v73 = vsub.s32 %v63, %v71
    %v74 = vadd.s32 %v56, 6
    %v75 = vcvt.s32.f32 %v74
    %v76 = vmul.f32 %v75, 0.14285715
    %v77 = vadd.f32 %v76, 0.001
    %v78 = vfloor.f32 %v77
    %v79 = vcvt.f32.s32.to.zero.pseudo %v78
    %vm80 = vcmp.eq.s32.totalorder %v79, 3
    %v81 = vsel %vm80, 0.04761905, 0.035714287
    %vm82 = vcmp.eq.s32.totalorder %v79, 2
    %v83 = vsel %vm82, 0.071428575, %v81
    %vm84 = vcmp.eq.s32.totalorder %v79, 1
    %v85 = vsel %vm84, 0.14285715, %v83
    %vm86 = vcmp.ge.s32.totalorder %v67, 0
    %vm87 = vcmp.ge.s32.totalorder %v68, 0
    %88 = vset.pattern.permute.xlu0 0
    %89 = vperm.xlu0 %88, %v79
    %v90 = vpop.permute.xlu0 %89
    %vm91 = vcmp.lt.s32.totalorder %v67, %v90
    %vm92 = vcmp.lt.s32.totalorder %v68, %v90
    %vm93 = vmand %vm86, %vm91
    %vm94 = vmand %vm87, %vm92
    %96 = vset.pattern.permute.xlu0 0
    %97 = vperm.xlu0 %96, %v85
    %v98 = vpop.permute.xlu0 %97
    %v100 = vsel %vm93, %v98, 0.0
    %v101 = vsel %vm94, %v98, 0.0
    %v102 = vadd.f32 %v100, 0.0
    %v103 = vadd.f32 %v101, 0.0
    %vm104 = vcmp.ge.s32.totalorder %v72, 0
    %vm105 = vcmp.ge.s32.totalorder %v73, 0
    %106 = vset.pattern.permute.xlu0 1
    %107 = vperm.xlu0 %106, %v79
    %v108 = vpop.permute.xlu0 %107
    %vm109 = vcmp.lt.s32.totalorder %v72, %v108
    %vm110 = vcmp.lt.s32.totalorder %v73, %v108
    %vm111 = vmand %vm104, %vm109
    %vm112 = vmand %vm105, %vm110
    %113 = vset.pattern.permute.xlu0 1
    %114 = vperm.xlu0 %113, %v85
    %v115 = vpop.permute.xlu0 %114
    %v117 = vsel %vm111, %v115, 0.0
    %v118 = vsel %vm112, %v115, 0.0
    %v119 = vadd.f32 %v117, 0.0
    %v120 = vadd.f32 %v118, 0.0
    %v121 = vcvt.s32.f32 %v56
    %v122 = vmul.f32 %v121, 0.14285715
    %v123 = vadd.f32 %v122, 0.001
    %v124 = vfloor.f32 %v123
    %v125 = vcvt.f32.s32.to.zero.pseudo %v124
    %v126 = vmul.u32 %v56, 2
    %v127 = vadd.s32 %v126, 6
    %v128 = vcvt.s32.f32 %v127
    %v129 = vmul.f32 %v128, 0.14285715
    %v130 = vadd.f32 %v129, 0.001
    %v131 = vfloor.f32 %v130
    %v132 = vcvt.f32.s32.to.zero.pseudo %v131
    %v133 = vsub.s32 %v132, %v125
    %vm134 = vcmp.eq.s32.totalorder %v133, 3
    %v135 = vsel %vm134, 0.04761905, 0.035714287
    %vm136 = vcmp.eq.s32.totalorder %v133, 2
    %v137 = vsel %vm136, 0.071428575, %v135
    %vm138 = vcmp.eq.s32.totalorder %v133, 1
    %v139 = vsel %vm138, 0.14285715, %v137
    %140 = vset.pattern.permute.xlu0 0
    %141 = vperm.xlu0 %140, %v125
    %v142 = vpop.permute.xlu0 %141
    %vm143 = vcmp.ge.s32.totalorder %v67, %v142
    %vm144 = vcmp.ge.s32.totalorder %v68, %v142
    %145 = vset.pattern.permute.xlu0 0
    %146 = vperm.xlu0 %145, %v132
    %v147 = vpop.permute.xlu0 %146
    %vm148 = vcmp.lt.s32.totalorder %v67, %v147
    %vm149 = vcmp.lt.s32.totalorder %v68, %v147
    %vm150 = vmand %vm143, %vm148
    %vm151 = vmand %vm144, %vm149
    %153 = vset.pattern.permute.xlu0 0
    %154 = vperm.xlu0 %153, %v139
    %v155 = vpop.permute.xlu0 %154
    %v157 = vsel %vm150, %v155, 0.0
    %v158 = vsel %vm151, %v155, 0.0
    %v159 = vadd.f32 %v102, %v157
    %v160 = vadd.f32 %v103, %v158
    %161 = vset.pattern.permute.xlu0 1
    %162 = vperm.xlu0 %161, %v125
    %v163 = vpop.permute.xlu0 %162
    %vm164 = vcmp.ge.s32.totalorder %v72, %v163
    %vm165 = vcmp.ge.s32.totalorder %v73, %v163
    %166 = vset.pattern.permute.xlu0 1
    %167 = vperm.xlu0 %166, %v132
    %v168 = vpop.permute.xlu0 %167
    %vm169 = vcmp.lt.s32.totalorder %v72, %v168
    %vm170 = vcmp.lt.s32.totalorder %v73, %v168
    %vm171 = vmand %vm164, %vm169
    %vm172 = vmand %vm165, %vm170
    %173 = vset.pattern.permute.xlu0 1
    %174 = vperm.xlu0 %173, %v139
    %v175 = vpop.permute.xlu0 %174
    %v177 = vsel %vm171, %v175, 0.0
    %v178 = vsel %vm172, %v175, 0.0
    %v179 = vadd.f32 %v119, %v177
    %v180 = vadd.f32 %v120, %v178
    %v181 = vcvt.s32.f32 %v126
    %v182 = vmul.f32 %v181, 0.14285715
    %v183 = vadd.f32 %v182, 0.001
    %v184 = vfloor.f32 %v183
    %v185 = vcvt.f32.s32.to.zero.pseudo %v184
    %v186 = vmul.u32 %v56, 3
    %v187 = vadd.s32 %v186, 6
    %v188 = vcvt.s32.f32 %v187
    %v189 = vmul.f32 %v188, 0.14285715
    %v190 = vadd.f32 %v189, 0.001
    %v191 = vfloor.f32 %v190
    %v192 = vcvt.f32.s32.to.zero.pseudo %v191
    %v193 = vsub.s32 %v192, %v185
    %vm194 = vcmp.eq.s32.totalorder %v193, 3
    %v195 = vsel %vm194, 0.04761905, 0.035714287
    %vm196 = vcmp.eq.s32.totalorder %v193, 2
    %v197 = vsel %vm196, 0.071428575, %v195
    %vm198 = vcmp.eq.s32.totalorder %v193, 1
    %v199 = vsel %vm198, 0.14285715, %v197
    %200 = vset.pattern.permute.xlu0 0
    %201 = vperm.xlu0 %200, %v185
    %v202 = vpop.permute.xlu0 %201
    %vm203 = vcmp.ge.s32.totalorder %v67, %v202
    %vm204 = vcmp.ge.s32.totalorder %v68, %v202
    %205 = vset.pattern.permute.xlu0 0
    %206 = vperm.xlu0 %205, %v192
    %v207 = vpop.permute.xlu0 %206
    %vm208 = vcmp.lt.s32.totalorder %v67, %v207
    %vm209 = vcmp.lt.s32.totalorder %v68, %v207
    %vm210 = vmand %vm203, %vm208
    %vm211 = vmand %vm204, %vm209
    %213 = vset.pattern.permute.xlu0 0
    %214 = vperm.xlu0 %213, %v199
    %v215 = vpop.permute.xlu0 %214
    %v217 = vsel %vm210, %v215, 0.0
    %v218 = vsel %vm211, %v215, 0.0
    %v219 = vadd.f32 %v159, %v217
    %v220 = vadd.f32 %v160, %v218
    %221 = vset.pattern.permute.xlu0 1
    %222 = vperm.xlu0 %221, %v185
    %v223 = vpop.permute.xlu0 %222
    %vm224 = vcmp.ge.s32.totalorder %v72, %v223
    %vm225 = vcmp.ge.s32.totalorder %v73, %v223
    %226 = vset.pattern.permute.xlu0 1
    %227 = vperm.xlu0 %226, %v192
    %v228 = vpop.permute.xlu0 %227
    %vm229 = vcmp.lt.s32.totalorder %v72, %v228
    %vm230 = vcmp.lt.s32.totalorder %v73, %v228
    %vm231 = vmand %vm224, %vm229
    %vm232 = vmand %vm225, %vm230
    %233 = vset.pattern.permute.xlu0 1
    %234 = vperm.xlu0 %233, %v199
    %v235 = vpop.permute.xlu0 %234
    %v237 = vsel %vm231, %v235, 0.0
    %v238 = vsel %vm232, %v235, 0.0
    %v239 = vadd.f32 %v179, %v237
    %v240 = vadd.f32 %v180, %v238
    %v241 = vcvt.s32.f32 %v186
    %v242 = vmul.f32 %v241, 0.14285715
    %v243 = vadd.f32 %v242, 0.001
    %v244 = vfloor.f32 %v243
    %v245 = vcvt.f32.s32.to.zero.pseudo %v244
    %v246 = vmul.u32 %v56, 4
    %v247 = vadd.s32 %v246, 6
    %v248 = vcvt.s32.f32 %v247
    %v249 = vmul.f32 %v248, 0.14285715
    %v250 = vadd.f32 %v249, 0.001
    %v251 = vfloor.f32 %v250
    %v252 = vcvt.f32.s32.to.zero.pseudo %v251
    %v253 = vsub.s32 %v252, %v245
    %vm254 = vcmp.eq.s32.totalorder %v253, 3
    %v255 = vsel %vm254, 0.04761905, 0.035714287
    %vm256 = vcmp.eq.s32.totalorder %v253, 2
    %v257 = vsel %vm256, 0.071428575, %v255
    %vm258 = vcmp.eq.s32.totalorder %v253, 1
    %v259 = vsel %vm258, 0.14285715, %v257
    %260 = vset.pattern.permute.xlu0 0
    %261 = vperm.xlu0 %260, %v245
    %v262 = vpop.permute.xlu0 %261
    %vm263 = vcmp.ge.s32.totalorder %v67, %v262
    %vm264 = vcmp.ge.s32.totalorder %v68, %v262
    %265 = vset.pattern.permute.xlu0 0
    %266 = vperm.xlu0 %265, %v252
    %v267 = vpop.permute.xlu0 %266
    %vm268 = vcmp.lt.s32.totalorder %v67, %v267
    %vm269 = vcmp.lt.s32.totalorder %v68, %v267
    %vm270 = vmand %vm263, %vm268
    %vm271 = vmand %vm264, %vm269
    %273 = vset.pattern.permute.xlu0 0
    %274 = vperm.xlu0 %273, %v259
    %v275 = vpop.permute.xlu0 %274
    %v277 = vsel %vm270, %v275, 0.0
    %v278 = vsel %vm271, %v275, 0.0
    %v279 = vadd.f32 %v219, %v277
    %v280 = vadd.f32 %v220, %v278
    %281 = vset.pattern.permute.xlu0 1
    %282 = vperm.xlu0 %281, %v245
    %v283 = vpop.permute.xlu0 %282
    %vm284 = vcmp.ge.s32.totalorder %v72, %v283
    %vm285 = vcmp.ge.s32.totalorder %v73, %v283
    %286 = vset.pattern.permute.xlu0 1
    %287 = vperm.xlu0 %286, %v252
    %v288 = vpop.permute.xlu0 %287
    %vm289 = vcmp.lt.s32.totalorder %v72, %v288
    %vm290 = vcmp.lt.s32.totalorder %v73, %v288
    %vm291 = vmand %vm284, %vm289
    %vm292 = vmand %vm285, %vm290
    %293 = vset.pattern.permute.xlu0 1
    %294 = vperm.xlu0 %293, %v259
    %v295 = vpop.permute.xlu0 %294
    %v297 = vsel %vm291, %v295, 0.0
    %v298 = vsel %vm292, %v295, 0.0
    %v299 = vadd.f32 %v239, %v297
    %v300 = vadd.f32 %v240, %v298
    %v301 = vcvt.s32.f32 %v246
    %v302 = vmul.f32 %v301, 0.14285715
    %v303 = vadd.f32 %v302, 0.001
    %v304 = vfloor.f32 %v303
    %v305 = vcvt.f32.s32.to.zero.pseudo %v304
    %v306 = vmul.u32 %v56, 5
    %v307 = vadd.s32 %v306, 6
    %v308 = vcvt.s32.f32 %v307
    %v309 = vmul.f32 %v308, 0.14285715
    %v310 = vadd.f32 %v309, 0.001
    %v311 = vfloor.f32 %v310
    %v312 = vcvt.f32.s32.to.zero.pseudo %v311
    %v313 = vsub.s32 %v312, %v305
    %vm314 = vcmp.eq.s32.totalorder %v313, 3
    %v315 = vsel %vm314, 0.04761905, 0.035714287
    %vm316 = vcmp.eq.s32.totalorder %v313, 2
    %v317 = vsel %vm316, 0.071428575, %v315
    %vm318 = vcmp.eq.s32.totalorder %v313, 1
    %v319 = vsel %vm318, 0.14285715, %v317
    %320 = vset.pattern.permute.xlu0 0
    %321 = vperm.xlu0 %320, %v305
    %v322 = vpop.permute.xlu0 %321
    %vm323 = vcmp.ge.s32.totalorder %v67, %v322
    %vm324 = vcmp.ge.s32.totalorder %v68, %v322
    %325 = vset.pattern.permute.xlu0 0
    %326 = vperm.xlu0 %325, %v312
    %v327 = vpop.permute.xlu0 %326
    %vm328 = vcmp.lt.s32.totalorder %v67, %v327
    %vm329 = vcmp.lt.s32.totalorder %v68, %v327
    %vm330 = vmand %vm323, %vm328
    %vm331 = vmand %vm324, %vm329
    %333 = vset.pattern.permute.xlu0 0
    %334 = vperm.xlu0 %333, %v319
    %v335 = vpop.permute.xlu0 %334
    %v337 = vsel %vm330, %v335, 0.0
    %v338 = vsel %vm331, %v335, 0.0
    %v339 = vadd.f32 %v279, %v337
    %v340 = vadd.f32 %v280, %v338
    %341 = vset.pattern.permute.xlu0 1
    %342 = vperm.xlu0 %341, %v305
    %v343 = vpop.permute.xlu0 %342
    %vm344 = vcmp.ge.s32.totalorder %v72, %v343
    %vm345 = vcmp.ge.s32.totalorder %v73, %v343
    %346 = vset.pattern.permute.xlu0 1
    %347 = vperm.xlu0 %346, %v312
    %v348 = vpop.permute.xlu0 %347
    %vm349 = vcmp.lt.s32.totalorder %v72, %v348
    %vm350 = vcmp.lt.s32.totalorder %v73, %v348
    %vm351 = vmand %vm344, %vm349
    %vm352 = vmand %vm345, %vm350
    %353 = vset.pattern.permute.xlu0 1
    %354 = vperm.xlu0 %353, %v319
    %v355 = vpop.permute.xlu0 %354
    %v357 = vsel %vm351, %v355, 0.0
    %v358 = vsel %vm352, %v355, 0.0
    %v359 = vadd.f32 %v299, %v357
    %v360 = vadd.f32 %v300, %v358
    %v361 = vcvt.s32.f32 %v306
    %v362 = vmul.f32 %v361, 0.14285715
    %v363 = vadd.f32 %v362, 0.001
    %v364 = vfloor.f32 %v363
    %v365 = vcvt.f32.s32.to.zero.pseudo %v364
    %v366 = vmul.u32 %v56, 6
    %v367 = vadd.s32 %v366, 6
    %v368 = vcvt.s32.f32 %v367
    %v369 = vmul.f32 %v368, 0.14285715
    %v370 = vadd.f32 %v369, 0.001
    %v371 = vfloor.f32 %v370
    %v372 = vcvt.f32.s32.to.zero.pseudo %v371
    %v373 = vsub.s32 %v372, %v365
    %vm374 = vcmp.eq.s32.totalorder %v373, 3
    %v375 = vsel %vm374, 0.04761905, 0.035714287
    %vm376 = vcmp.eq.s32.totalorder %v373, 2
    %v377 = vsel %vm376, 0.071428575, %v375
    %vm378 = vcmp.eq.s32.totalorder %v373, 1
    %v379 = vsel %vm378, 0.14285715, %v377
    %380 = vset.pattern.permute.xlu0 0
    %381 = vperm.xlu0 %380, %v365
    %v382 = vpop.permute.xlu0 %381
    %vm383 = vcmp.ge.s32.totalorder %v67, %v382
    %vm384 = vcmp.ge.s32.totalorder %v68, %v382
    %385 = vset.pattern.permute.xlu0 0
    %386 = vperm.xlu0 %385, %v372
    %v387 = vpop.permute.xlu0 %386
    %vm388 = vcmp.lt.s32.totalorder %v67, %v387
    %vm389 = vcmp.lt.s32.totalorder %v68, %v387
    %vm390 = vmand %vm383, %vm388
    %vm391 = vmand %vm384, %vm389
    %393 = vset.pattern.permute.xlu0 0
    %394 = vperm.xlu0 %393, %v379
    %v395 = vpop.permute.xlu0 %394
    %v397 = vsel %vm390, %v395, 0.0
    %v398 = vsel %vm391, %v395, 0.0
    %v399 = vadd.f32 %v339, %v397
    %v400 = vadd.f32 %v340, %v398
    %401 = vset.pattern.permute.xlu0 1
    %402 = vperm.xlu0 %401, %v365
    %v403 = vpop.permute.xlu0 %402
    %vm404 = vcmp.ge.s32.totalorder %v72, %v403
    %vm405 = vcmp.ge.s32.totalorder %v73, %v403
    %406 = vset.pattern.permute.xlu0 1
    %407 = vperm.xlu0 %406, %v372
    %v408 = vpop.permute.xlu0 %407
    %vm409 = vcmp.lt.s32.totalorder %v72, %v408
    %vm410 = vcmp.lt.s32.totalorder %v73, %v408
    %vm411 = vmand %vm404, %vm409
    %vm412 = vmand %vm405, %vm410
    %413 = vset.pattern.permute.xlu0 1
    %414 = vperm.xlu0 %413, %v379
    %v415 = vpop.permute.xlu0 %414
    %v417 = vsel %vm411, %v415, 0.0
    %v418 = vsel %vm412, %v415, 0.0
    %v419 = vadd.f32 %v359, %v417
    %v420 = vadd.f32 %v360, %v418
    %v421 = vcvt.s32.f32 %v366
    %v422 = vmul.f32 %v421, 0.14285715
    %v423 = vadd.f32 %v422, 0.001
    %v424 = vfloor.f32 %v423
    %v425 = vcvt.f32.s32.to.zero.pseudo %v424
    %v426 = vmul.u32 %v56, 7
    %v427 = vadd.s32 %v426, 6
    %v428 = vcvt.s32.f32 %v427
    %v429 = vmul.f32 %v428, 0.14285715
    %v430 = vadd.f32 %v429, 0.001
    %v431 = vfloor.f32 %v430
    %v432 = vcvt.f32.s32.to.zero.pseudo %v431
    %v433 = vsub.s32 %v432, %v425
    %vm434 = vcmp.eq.s32.totalorder %v433, 3
    %v435 = vsel %vm434, 0.04761905, 0.035714287
    %vm436 = vcmp.eq.s32.totalorder %v433, 2
    %v437 = vsel %vm436, 0.071428575, %v435
    %vm438 = vcmp.eq.s32.totalorder %v433, 1
    %v439 = vsel %vm438, 0.14285715, %v437
    %440 = vset.pattern.permute.xlu0 0
    %441 = vperm.xlu0 %440, %v425
    %v442 = vpop.permute.xlu0 %441
    %vm443 = vcmp.ge.s32.totalorder %v67, %v442
    %vm444 = vcmp.ge.s32.totalorder %v68, %v442
    %445 = vset.pattern.permute.xlu0 0
    %446 = vperm.xlu0 %445, %v432
    %v447 = vpop.permute.xlu0 %446
    %vm448 = vcmp.lt.s32.totalorder %v67, %v447
    %vm449 = vcmp.lt.s32.totalorder %v68, %v447
    %vm450 = vmand %vm443, %vm448
    %vm451 = vmand %vm444, %vm449
    %453 = vset.pattern.permute.xlu0 0
    %454 = vperm.xlu0 %453, %v439
    %v455 = vpop.permute.xlu0 %454
    %v457 = vsel %vm450, %v455, 0.0
    %v458 = vsel %vm451, %v455, 0.0
    %v459 = vadd.f32 %v399, %v457
    %v460 = vadd.f32 %v400, %v458
    %461 = vset.pattern.permute.xlu0 1
    %462 = vperm.xlu0 %461, %v425
    %v463 = vpop.permute.xlu0 %462
    %vm464 = vcmp.ge.s32.totalorder %v72, %v463
    %vm465 = vcmp.ge.s32.totalorder %v73, %v463
    %466 = vset.pattern.permute.xlu0 1
    %467 = vperm.xlu0 %466, %v432
    %v468 = vpop.permute.xlu0 %467
    %vm469 = vcmp.lt.s32.totalorder %v72, %v468
    %vm470 = vcmp.lt.s32.totalorder %v73, %v468
    %vm471 = vmand %vm464, %vm469
    %vm472 = vmand %vm465, %vm470
    %473 = vset.pattern.permute.xlu0 1
    %474 = vperm.xlu0 %473, %v439
    %v475 = vpop.permute.xlu0 %474
    %v477 = vsel %vm471, %v475, 0.0
    %v478 = vsel %vm472, %v475, 0.0
    %v479 = vadd.f32 %v419, %v477
    %v480 = vadd.f32 %v420, %v478
    %v481 = vmul.f32 %v459, %v479
    %v482 = vmul.f32 %v460, %v480
    %v483 = vld [vmem:[#allocation5] sm:$0xff]
    %v484 = vld [vmem:[#allocation5 + $0x8] sm:$0xff]
    %485 = vmatpush.xpose.msra.mxu0 0.0
    %486 = vmatpush.xpose.msra.mxu0 0.0
    %487 = vmatpush.xpose.msra.mxu0 0.0
    %488 = vmatpush.xpose.msra.mxu0 0.0
    %489 = vmatpush.xpose.msra.mxu0 0.0
    %490 = vmatpush.xpose.msra.mxu0 0.0
    %491 = vmatpush.xpose.msra.mxu0 0.0
    %492 = vmatpush.xpose.msra.mxu0 0.0
    %493 = vmatpush.xpose.msra.mxu0 0.0
    %494 = vmatpush.xpose.msra.mxu0 0.0
    %495 = vmatpush.xpose.msra.mxu0 0.0
    %496 = vmatpush.xpose.msra.mxu0 0.0
    %497 = vmatpush.xpose.msra.mxu0 0.0
    %498 = vmatpush.xpose.msra.mxu0 0.0
    %499 = vmatpush.xpose.msra.mxu0 0.0
    %v500 = vand.u32 %v483, 4294901760
    %501 = vmatpush.xpose.msra.mxu0 %v500
    %v502 = vand.u32 %v481, 4294901760
    %v503 = vsub.f32 %v481, %v502
    %v504 = vand.u32 %v503, 4294901760
    %v505 = vsub.f32 %v503, %v504
    %v506 = vand.u32 %v505, 4294901760
    %507 = vmatmul.f32.gmra.mxu0 %v506
    %v508 = vpop.f32.mrf.mxu0
    %v509 = vadd.f32 0.0, %v508
    %510 = vdwg.mxu0
    %511 = vmatpush.xpose.msra.mxu0 0.0
    %512 = vmatpush.xpose.msra.mxu0 0.0
    %513 = vmatpush.xpose.msra.mxu0 0.0
    %514 = vmatpush.xpose.msra.mxu0 0.0
    %515 = vmatpush.xpose.msra.mxu0 0.0
    %516 = vmatpush.xpose.msra.mxu0 0.0
    %517 = vmatpush.xpose.msra.mxu0 0.0
    %518 = vmatpush.xpose.msra.mxu0 0.0
    %519 = vmatpush.xpose.msra.mxu0 0.0
    %520 = vmatpush.xpose.msra.mxu0 0.0
    %521 = vmatpush.xpose.msra.mxu0 0.0
    %522 = vmatpush.xpose.msra.mxu0 0.0
    %523 = vmatpush.xpose.msra.mxu0 0.0
    %524 = vmatpush.xpose.msra.mxu0 0.0
    %525 = vmatpush.xpose.msra.mxu0 0.0
    %v526 = vand.u32 %v483, 4294901760
    %v527 = vsub.f32 %v483, %v526
    %v528 = vand.u32 %v527, 4294901760
    %v529 = vsub.f32 %v527, %v528
    %v530 = vand.u32 %v529, 4294901760
    %531 = vmatpush.xpose.msra.mxu0 %v530
    %v532 = vand.u32 %v481, 4294901760
    %533 = vmatmul.f32.gmra.mxu0 %v532
    %v534 = vpop.f32.mrf.mxu0
    %v535 = vadd.f32 %v509, %v534
    %536 = vdwg.mxu0
    %537 = vmatpush.xpose.msra.mxu0 0.0
    %538 = vmatpush.xpose.msra.mxu0 0.0
    %539 = vmatpush.xpose.msra.mxu0 0.0
    %540 = vmatpush.xpose.msra.mxu0 0.0
    %541 = vmatpush.xpose.msra.mxu0 0.0
    %542 = vmatpush.xpose.msra.mxu0 0.0
    %543 = vmatpush.xpose.msra.mxu0 0.0
    %544 = vmatpush.xpose.msra.mxu0 0.0
    %545 = vmatpush.xpose.msra.mxu0 0.0
    %546 = vmatpush.xpose.msra.mxu0 0.0
    %547 = vmatpush.xpose.msra.mxu0 0.0
    %548 = vmatpush.xpose.msra.mxu0 0.0
    %549 = vmatpush.xpose.msra.mxu0 0.0
    %550 = vmatpush.xpose.msra.mxu0 0.0
    %551 = vmatpush.xpose.msra.mxu0 0.0
    %v552 = vand.u32 %v483, 4294901760
    %v553 = vsub.f32 %v483, %v552
    %554 = vmatpush.xpose.msra.mxu0 %v553
    %v555 = vand.u32 %v481, 4294901760
    %v556 = vsub.f32 %v481, %v555
    %557 = vmatmul.f32.gmra.mxu0 %v556
    %v558 = vpop.f32.mrf.mxu0
    %v559 = vadd.f32 %v535, %v558
    %560 = vdwg.mxu0
    %561 = vmatpush.xpose.msra.mxu0 0.0
    %562 = vmatpush.xpose.msra.mxu0 0.0
    %563 = vmatpush.xpose.msra.mxu0 0.0
    %564 = vmatpush.xpose.msra.mxu0 0.0
    %565 = vmatpush.xpose.msra.mxu0 0.0
    %566 = vmatpush.xpose.msra.mxu0 0.0
    %567 = vmatpush.xpose.msra.mxu0 0.0
    %568 = vmatpush.xpose.msra.mxu0 0.0
    %569 = vmatpush.xpose.msra.mxu0 0.0
    %570 = vmatpush.xpose.msra.mxu0 0.0
    %571 = vmatpush.xpose.msra.mxu0 0.0
    %572 = vmatpush.xpose.msra.mxu0 0.0
    %573 = vmatpush.xpose.msra.mxu0 0.0
    %574 = vmatpush.xpose.msra.mxu0 0.0
    %575 = vmatpush.xpose.msra.mxu0 0.0
    %v576 = vand.u32 %v483, 4294901760
    %577 = vmatpush.xpose.msra.mxu0 %v576
    %v578 = vand.u32 %v481, 4294901760
    %v579 = vsub.f32 %v481, %v578
    %v580 = vand.u32 %v579, 4294901760
    %581 = vmatmul.f32.gmra.mxu0 %v580
    %v582 = vpop.f32.mrf.mxu0
    %v583 = vadd.f32 %v559, %v582
    %584 = vdwg.mxu0
    %585 = vmatpush.xpose.msra.mxu0 0.0
    %586 = vmatpush.xpose.msra.mxu0 0.0
    %587 = vmatpush.xpose.msra.mxu0 0.0
    %588 = vmatpush.xpose.msra.mxu0 0.0
    %589 = vmatpush.xpose.msra.mxu0 0.0
    %590 = vmatpush.xpose.msra.mxu0 0.0
    %591 = vmatpush.xpose.msra.mxu0 0.0
    %592 = vmatpush.xpose.msra.mxu0 0.0
    %593 = vmatpush.xpose.msra.mxu0 0.0
    %594 = vmatpush.xpose.msra.mxu0 0.0
    %595 = vmatpush.xpose.msra.mxu0 0.0
    %596 = vmatpush.xpose.msra.mxu0 0.0
    %597 = vmatpush.xpose.msra.mxu0 0.0
    %598 = vmatpush.xpose.msra.mxu0 0.0
    %599 = vmatpush.xpose.msra.mxu0 0.0
    %v600 = vand.u32 %v483, 4294901760
    %v601 = vsub.f32 %v483, %v600
    %v602 = vand.u32 %v601, 4294901760
    %603 = vmatpush.xpose.msra.mxu0 %v602
    %v604 = vand.u32 %v481, 4294901760
    %605 = vmatmul.f32.gmra.mxu0 %v604
    %v606 = vpop.f32.mrf.mxu0
    %v607 = vadd.f32 %v583, %v606
    %608 = vdwg.mxu0
    %609 = vmatpush.xpose.msra.mxu0 0.0
    %610 = vmatpush.xpose.msra.mxu0 0.0
    %611 = vmatpush.xpose.msra.mxu0 0.0
    %612 = vmatpush.xpose.msra.mxu0 0.0
    %613 = vmatpush.xpose.msra.mxu0 0.0
    %614 = vmatpush.xpose.msra.mxu0 0.0
    %615 = vmatpush.xpose.msra.mxu0 0.0
    %616 = vmatpush.xpose.msra.mxu0 0.0
    %617 = vmatpush.xpose.msra.mxu0 0.0
    %618 = vmatpush.xpose.msra.mxu0 0.0
    %619 = vmatpush.xpose.msra.mxu0 0.0
    %620 = vmatpush.xpose.msra.mxu0 0.0
    %621 = vmatpush.xpose.msra.mxu0 0.0
    %622 = vmatpush.xpose.msra.mxu0 0.0
    %623 = vmatpush.xpose.msra.mxu0 0.0
    %v624 = vand.u32 %v483, 4294901760
    %625 = vmatpush.xpose.msra.mxu0 %v624
    %v626 = vand.u32 %v481, 4294901760
    %627 = vmatmul.f32.gmra.mxu0 %v626
    %v628 = vpop.f32.mrf.mxu0
    %v629 = vadd.f32 %v607, %v628
    %630 = vdwg.mxu0
    %631 = vmatpush.xpose.msra.mxu0 0.0
    %632 = vmatpush.xpose.msra.mxu0 0.0
    %633 = vmatpush.xpose.msra.mxu0 0.0
    %634 = vmatpush.xpose.msra.mxu0 0.0
    %635 = vmatpush.xpose.msra.mxu0 0.0
    %636 = vmatpush.xpose.msra.mxu0 0.0
    %637 = vmatpush.xpose.msra.mxu0 0.0
    %638 = vmatpush.xpose.msra.mxu0 0.0
    %639 = vmatpush.xpose.msra.mxu0 0.0
    %640 = vmatpush.xpose.msra.mxu0 0.0
    %641 = vmatpush.xpose.msra.mxu0 0.0
    %642 = vmatpush.xpose.msra.mxu0 0.0
    %643 = vmatpush.xpose.msra.mxu0 0.0
    %644 = vmatpush.xpose.msra.mxu0 0.0
    %645 = vmatpush.xpose.msra.mxu0 0.0
    %v646 = vand.u32 %v484, 4294901760
    %647 = vmatpush.xpose.msra.mxu0 %v646
    %v648 = vand.u32 %v482, 4294901760
    %v649 = vsub.f32 %v482, %v648
    %v650 = vand.u32 %v649, 4294901760
    %v651 = vsub.f32 %v649, %v650
    %v652 = vand.u32 %v651, 4294901760
    %653 = vmatmul.f32.gmra.mxu0 %v652
    %v654 = vpop.f32.mrf.mxu0
    %v655 = vadd.f32 %v629, %v654
    %656 = vdwg.mxu0
    %657 = vmatpush.xpose.msra.mxu0 0.0
    %658 = vmatpush.xpose.msra.mxu0 0.0
    %659 = vmatpush.xpose.msra.mxu0 0.0
    %660 = vmatpush.xpose.msra.mxu0 0.0
    %661 = vmatpush.xpose.msra.mxu0 0.0
    %662 = vmatpush.xpose.msra.mxu0 0.0
    %663 = vmatpush.xpose.msra.mxu0 0.0
    %664 = vmatpush.xpose.msra.mxu0 0.0
    %665 = vmatpush.xpose.msra.mxu0 0.0
    %666 = vmatpush.xpose.msra.mxu0 0.0
    %667 = vmatpush.xpose.msra.mxu0 0.0
    %668 = vmatpush.xpose.msra.mxu0 0.0
    %669 = vmatpush.xpose.msra.mxu0 0.0
    %670 = vmatpush.xpose.msra.mxu0 0.0
    %671 = vmatpush.xpose.msra.mxu0 0.0
    %v672 = vand.u32 %v484, 4294901760
    %v673 = vsub.f32 %v484, %v672
    %v674 = vand.u32 %v673, 4294901760
    %v675 = vsub.f32 %v673, %v674
    %v676 = vand.u32 %v675, 4294901760
    %677 = vmatpush.xpose.msra.mxu0 %v676
    %v678 = vand.u32 %v482, 4294901760
    %679 = vmatmul.f32.gmra.mxu0 %v678
    %v680 = vpop.f32.mrf.mxu0
    %v681 = vadd.f32 %v655, %v680
    %682 = vdwg.mxu0
    %683 = vmatpush.xpose.msra.mxu0 0.0
    %684 = vmatpush.xpose.msra.mxu0 0.0
    %685 = vmatpush.xpose.msra.mxu0 0.0
    %686 = vmatpush.xpose.msra.mxu0 0.0
    %687 = vmatpush.xpose.msra.mxu0 0.0
    %688 = vmatpush.xpose.msra.mxu0 0.0
    %689 = vmatpush.xpose.msra.mxu0 0.0
    %690 = vmatpush.xpose.msra.mxu0 0.0
    %691 = vmatpush.xpose.msra.mxu0 0.0
    %692 = vmatpush.xpose.msra.mxu0 0.0
    %693 = vmatpush.xpose.msra.mxu0 0.0
    %694 = vmatpush.xpose.msra.mxu0 0.0
    %695 = vmatpush.xpose.msra.mxu0 0.0
    %696 = vmatpush.xpose.msra.mxu0 0.0
    %697 = vmatpush.xpose.msra.mxu0 0.0
    %v698 = vand.u32 %v484, 4294901760
    %v699 = vsub.f32 %v484, %v698
    %700 = vmatpush.xpose.msra.mxu0 %v699
    %v701 = vand.u32 %v482, 4294901760
    %v702 = vsub.f32 %v482, %v701
    %703 = vmatmul.f32.gmra.mxu0 %v702
    %v704 = vpop.f32.mrf.mxu0
    %v705 = vadd.f32 %v681, %v704
    %706 = vdwg.mxu0
    %707 = vmatpush.xpose.msra.mxu0 0.0
    %708 = vmatpush.xpose.msra.mxu0 0.0
    %709 = vmatpush.xpose.msra.mxu0 0.0
    %710 = vmatpush.xpose.msra.mxu0 0.0
    %711 = vmatpush.xpose.msra.mxu0 0.0
    %712 = vmatpush.xpose.msra.mxu0 0.0
    %713 = vmatpush.xpose.msra.mxu0 0.0
    %714 = vmatpush.xpose.msra.mxu0 0.0
    %715 = vmatpush.xpose.msra.mxu0 0.0
    %716 = vmatpush.xpose.msra.mxu0 0.0
    %717 = vmatpush.xpose.msra.mxu0 0.0
    %718 = vmatpush.xpose.msra.mxu0 0.0
    %719 = vmatpush.xpose.msra.mxu0 0.0
    %720 = vmatpush.xpose.msra.mxu0 0.0
    %721 = vmatpush.xpose.msra.mxu0 0.0
    %v722 = vand.u32 %v484, 4294901760
    %723 = vmatpush.xpose.msra.mxu0 %v722
    %v724 = vand.u32 %v482, 4294901760
    %v725 = vsub.f32 %v482, %v724
    %v726 = vand.u32 %v725, 4294901760
    %727 = vmatmul.f32.gmra.mxu0 %v726
    %v728 = vpop.f32.mrf.mxu0
    %v729 = vadd.f32 %v705, %v728
    %730 = vdwg.mxu0
    %731 = vmatpush.xpose.msra.mxu0 0.0
    %732 = vmatpush.xpose.msra.mxu0 0.0
    %733 = vmatpush.xpose.msra.mxu0 0.0
    %734 = vmatpush.xpose.msra.mxu0 0.0
    %735 = vmatpush.xpose.msra.mxu0 0.0
    %736 = vmatpush.xpose.msra.mxu0 0.0
    %737 = vmatpush.xpose.msra.mxu0 0.0
    %738 = vmatpush.xpose.msra.mxu0 0.0
    %739 = vmatpush.xpose.msra.mxu0 0.0
    %740 = vmatpush.xpose.msra.mxu0 0.0
    %741 = vmatpush.xpose.msra.mxu0 0.0
    %742 = vmatpush.xpose.msra.mxu0 0.0
    %743 = vmatpush.xpose.msra.mxu0 0.0
    %744 = vmatpush.xpose.msra.mxu0 0.0
    %745 = vmatpush.xpose.msra.mxu0 0.0
    %v746 = vand.u32 %v484, 4294901760
    %v747 = vsub.f32 %v484, %v746
    %v748 = vand.u32 %v747, 4294901760
    %749 = vmatpush.xpose.msra.mxu0 %v748
    %v750 = vand.u32 %v482, 4294901760
    %751 = vmatmul.f32.gmra.mxu0 %v750
    %v752 = vpop.f32.mrf.mxu0
    %v753 = vadd.f32 %v729, %v752
    %754 = vdwg.mxu0
    %755 = vmatpush.xpose.msra.mxu0 0.0
    %756 = vmatpush.xpose.msra.mxu0 0.0
    %757 = vmatpush.xpose.msra.mxu0 0.0
    %758 = vmatpush.xpose.msra.mxu0 0.0
    %759 = vmatpush.xpose.msra.mxu0 0.0
    %760 = vmatpush.xpose.msra.mxu0 0.0
    %761 = vmatpush.xpose.msra.mxu0 0.0
    %762 = vmatpush.xpose.msra.mxu0 0.0
    %763 = vmatpush.xpose.msra.mxu0 0.0
    %764 = vmatpush.xpose.msra.mxu0 0.0
    %765 = vmatpush.xpose.msra.mxu0 0.0
    %766 = vmatpush.xpose.msra.mxu0 0.0
    %767 = vmatpush.xpose.msra.mxu0 0.0
    %768 = vmatpush.xpose.msra.mxu0 0.0
    %769 = vmatpush.xpose.msra.mxu0 0.0
    %v770 = vand.u32 %v484, 4294901760
    %771 = vmatpush.xpose.msra.mxu0 %v770
    %v772 = vand.u32 %v482, 4294901760
    %773 = vmatmul.f32.gmra.mxu0 %v772
    %v774 = vpop.f32.mrf.mxu0
    %v775 = vadd.f32 %v753, %v774
    %776 = vdwg.mxu0
    %vm777 = vcmask 60416
    %778 = vst.msk [vmem:[#allocation7] sm:$0xf] %vm777, %v775
    // Predicated region
    $region18: #{tpu_custom_call.1} parent=1 // pred_check
      _
    $region19: #{tpu_custom_call.1} parent=1 // pred_check_branch
      %780 = sbr.rel (0) target = $region21
    $region20: #{tpu_custom_call.1} parent=1 // pred_region
      %782 = vsyncadd [#allocation4], 0
      %s784 = sshll.u32 [#allocation7], 4
      %s785 = int_to_ptr.vmem [resolvable:$true] %s784
      %s786 = sshll.u32 %s2, 4
      %s787 = int_to_ptr.hbm [resolvable:$true] %s786
      %789 = dma.vmem_to_hbm [thread:$0]  %s785, 64, %s787, [#allocation4]
    $region21: #{tpu_custom_call.1} parent=1 // pred_fallthru
      _
    // Predicated region
    $region22: #{tpu_custom_call.1} parent=1 // pred_check
      _
    $region23: #{tpu_custom_call.1} parent=1 // pred_check_branch
      %791 = sbr.rel (0) target = $region25
    $region24: #{tpu_custom_call.1} parent=1 // pred_region
      %793 = dma.done [#allocation4], 64
    $region25: #{tpu_custom_call.1} parent=1 // pred_fallthru
      _
    %794 = vsyncpa [#allocation3], 1
    %795 = vsyncpa [#allocation6], 1
    %796 = vsyncpa [#allocation4], 1

</llo_original>
